<compile_context>
chip_gen: v5e
topology: v5e:2x2
jax: 0.10.0
libtpu: 0.0.40
codegen_flags: <defaults>
</compile_context>

<pallas_src>
import jax
import jax.numpy as jnp
import numpy as np
from jax.experimental import pallas as pl
from jax.experimental.pallas import tpu as pltpu

KERNEL_NUM = 30            # output channels per conv
KERNEL_SIZES = (3, 4, 5)   # temporal widths
TOTAL_TAPS = sum(KERNEL_SIZES)   # 12 fused weight column groups


def textcnn_kernel(x_ref, wall_ref, bcat_ref, lw_ref, lb_ref, o_ref):
    """One grid step processes TB batch elements.

    x_ref   : (TB*L, Dp)      flattened batch block of embeddings
    wall_ref: (Dp, 12*C)      fused conv weights, columns grouped per (k, dk)
    bcat_ref: (1, 3*C)        conv biases, concatenated in k=3|4|5 order
    lw_ref  : (1, 3*C)        final linear weight
    lb_ref  : (1, 1)          final linear bias
    o_ref   : (TB, 1)         logits for this batch block
    """
    tb = o_ref.shape[0]
    seq = x_ref.shape[0] // tb
    c = KERNEL_NUM

    # One lane-dense MXU matmul instead of 12 tiny ones; f32 accumulation.
    y = jnp.dot(x_ref[...], wall_ref[...], preferred_element_type=jnp.float32)
    y = y.reshape(tb, seq, TOTAL_TAPS * c)           # (TB, L, 12*C)

    # Valid full-width conv == sum of time-shifted slices of Y (VPU adds).
    pooled = []
    col = 0
    for k in KERNEL_SIZES:
        lk = seq - k + 1
        acc = y[:, 0:lk, col:col + c]
        for dk in range(1, k):
            acc = acc + y[:, dk:dk + lk, col + dk * c:col + (dk + 1) * c]
        # MaxPool1d over time.  Bias + ReLU are applied AFTER the max (exactly
        # equivalent: per-channel bias, monotone ReLU), on the small pooled tile.
        pooled.append(jnp.max(acc, axis=1))          # (TB, C)
        col += k * c

    feat = jnp.concatenate(pooled, axis=1)           # (TB, 3*C)
    feat = jnp.maximum(feat + bcat_ref[...], 0.0)    # bias + ReLU
    # 1-unit Linear as VPU multiply + lane reduce (avoids degenerate MXU op).
    logit = jnp.sum(feat * lw_ref[...], axis=1, keepdims=True) + lb_ref[...]
    o_ref[...] = logit.astype(o_ref.dtype)           # one (TB, 1) store / step


def _round_up(n, m):
    return ((n + m - 1) // m) * m


def textcnn_forward(x_bld, params, *, tb=8, compute_dtype=jnp.float32):
    """x_bld: (B, L, D) float32 (NCHW input with the C=1 dim squeezed).

    Returns logits (B, 1) float32.  `tb` = batch elements per grid step.
    compute_dtype=jnp.bfloat16 uses bf16 MXU operands with f32 accumulation
    (preferred on v6e / v7x).
    """
    B, L, D = x_bld.shape
    w3, b3, w4, b4, w5, b5, lw, lb = params
    c = KERNEL_NUM

    # ---- host-side (XLA, runs once) weight prep: hoisted transposes + fusion
    blocks = []
    for w, k in zip((w3, w4, w5), KERNEL_SIZES):
        for dk in range(k):
            blocks.append(jnp.transpose(w[:, dk, :]))    # (D, C)
    w_all = jnp.concatenate(blocks, axis=1)              # (D, 12*C)
    b_cat = jnp.concatenate([b3, b4, b5], axis=1)        # (1, 3*C)

    # Zero-pad embedding dim to a multiple of 128 lanes (3000 -> 3072 in the
    # original module); zero rows do not change the dot products.
    dp = _round_up(D, 128)
    if dp != D:
        x_bld = jnp.pad(x_bld, ((0, 0), (0, 0), (0, dp - D)))
        w_all = jnp.pad(w_all, ((0, dp - D), (0, 0)))

    # Pad batch to a multiple of the batch block.
    bp = _round_up(B, tb)
    if bp != B:
        x_bld = jnp.pad(x_bld, ((0, bp - B), (0, 0), (0, 0)))
    nb = bp // tb
    assert nb == 1 or tb % 8 == 0, "batch block must be a multiple of 8"

    x2d = x_bld.reshape(bp * L, dp).astype(compute_dtype)
    w_all = w_all.astype(compute_dtype)
    b_cat = b_cat.astype(jnp.float32)
    lw32 = lw.astype(jnp.float32)
    lb32 = lb.astype(jnp.float32)

    # VMEM per step (double-buffered x block + resident weights) stays well
    # under the 32 MiB scoped default even at D=3072 / tb=8; size tb against
    # v7x's 64 MiB physical VMEM if the original D=3000 is restored.
    out = pl.pallas_call(
        textcnn_kernel,
        out_shape=jax.ShapeDtypeStruct((bp, 1), jnp.float32),
        grid=(nb,),
        in_specs=[
            pl.BlockSpec((tb * L, dp), lambda i: (i, 0)),
            pl.BlockSpec(w_all.shape, lambda i: (0, 0)),
            pl.BlockSpec(b_cat.shape, lambda i: (0, 0)),
            pl.BlockSpec(lw32.shape, lambda i: (0, 0)),
            pl.BlockSpec(lb32.shape, lambda i: (0, 0)),
        ],
        out_specs=pl.BlockSpec((tb, 1), lambda i: (i, 0)),
        compiler_params=pltpu.CompilerParams(
            dimension_semantics=("parallel",)),
    )(x2d, w_all, b_cat, lw32, lb32)
    return out[:B]


def textcnn_ref(x_bld, params, compute_dtype=jnp.float32):
    """Pure-JAX reference matching the PyTorch forward semantics."""
    w3, b3, w4, b4, w5, b5, lw, lb = params
    B, L, D = x_bld.shape
    x = x_bld.astype(compute_dtype)
    pooled = []
    for w, b, k in ((w3, b3, 3), (w4, b4, 4), (w5, b5, 5)):
        wc = w.astype(compute_dtype)
        lk = L - k + 1
        s = jnp.zeros((B, lk, KERNEL_NUM), jnp.float32)
        for dk in range(k):
            s = s + jnp.einsum('bld,cd->blc', x[:, dk:dk + lk, :], wc[:, dk, :],
                               preferred_element_type=jnp.float32)
        s = jnp.maximum(s + b[None, :, :], 0.0)       # bias + ReLU
        pooled.append(jnp.max(s, axis=1))             # max over time -> (B, C)
    feat = jnp.concatenate(pooled, axis=1)            # (B, 3*C)
    return feat @ lw.T + lb


def init_params(key, embed_dim):
    """Deterministic synthetic parameters (shapes match the nn.Module)."""
    keys = jax.random.split(key, 8)
    params = []
    for i, k in enumerate(KERNEL_SIZES):
        w = 0.05 * jax.random.normal(keys[2 * i], (KERNEL_NUM, k, embed_dim),
                                     jnp.float32)
        b = 0.05 * jax.random.normal(keys[2 * i + 1], (1, KERNEL_NUM),
                                     jnp.float32)
        params += [w, b]
    lw = 0.05 * jax.random.normal(keys[6], (1, 3 * KERNEL_NUM), jnp.float32)
    lb = 0.05 * jax.random.normal(keys[7], (1, 1), jnp.float32)
    params += [lw, lb]
    return tuple(params)


if __name__ == "__main__":
    # Small shapes consistent with the module (original hardcodes D=3000).
    B, L, D = 16, 16, 128

    key = jax.random.PRNGKey(0)
    k_x, k_p = jax.random.split(key)

    # PyTorch-style NCHW input (B, 1, L, D); squeeze the dummy channel dim.
    x_nchw = jax.random.normal(k_x, (B, 1, L, D), jnp.float32)
    x_bld = x_nchw[:, 0, :, :]
    params = init_params(k_p, D)

    ref32 = textcnn_ref(x_bld, params)

    # f32 operands (tight check; works on every generation).
    out32 = jax.block_until_ready(textcnn_forward(x_bld, params, tb=8))
    if not np.allclose(np.asarray(out32), np.asarray(ref32),
                       atol=1e-3, rtol=1e-3):
        raise AssertionError(
            f"f32 mismatch:\n{np.asarray(out32)}\nref=\n{np.asarray(ref32)}")

    # bf16 operands with f32 accumulation (preferred MXU mode on v6e / v7x).
    out_bf = jax.block_until_ready(
        textcnn_forward(x_bld, params, tb=8, compute_dtype=jnp.bfloat16))
    ref_bf = textcnn_ref(x_bld, params, compute_dtype=jnp.bfloat16)
    if not np.allclose(np.asarray(out_bf), np.asarray(ref_bf),
                       atol=1e-2, rtol=1e-2):
        raise AssertionError(
            f"bf16 mismatch:\n{np.asarray(out_bf)}\nref=\n{np.asarray(ref_bf)}")

    print("KERNEL_OK")
</pallas_src>

<mosaic_0001>
module attributes {stable_mosaic.version = 11 : i64} {
  func.func @textcnn_kernel(%arg0: i32, %arg1: memref<128x128xf32, #tpu.memory_space<vmem>>, %arg2: memref<128x360xf32, #tpu.memory_space<vmem>>, %arg3: memref<1x90xf32, #tpu.memory_space<vmem>>, %arg4: memref<1x90xf32, #tpu.memory_space<vmem>>, %arg5: memref<1x1xf32, #tpu.memory_space<vmem>>, %arg6: memref<8x1xf32, #tpu.memory_space<vmem>>) attributes {dimension_semantics = [#tpu.dimension_semantics<parallel>], iteration_bounds = array<i64: 2>, scalar_prefetch = 0 : i64, scratch_operands = 0 : i64, tpu.core_type = #tpu.core_type<tc>, window_params = [{transform_indices = @transform_0, window_bounds = array<i64: 128, 128>}, {pipeline_mode = #tpu.pipeline_mode<synchronous>, transform_indices = @transform_1, window_bounds = array<i64: 128, 360>}, {pipeline_mode = #tpu.pipeline_mode<synchronous>, transform_indices = @transform_2, window_bounds = array<i64: 1, 90>}, {pipeline_mode = #tpu.pipeline_mode<synchronous>, transform_indices = @transform_3, window_bounds = array<i64: 1, 90>}, {pipeline_mode = #tpu.pipeline_mode<synchronous>, transform_indices = @transform_4, window_bounds = array<i64: 1, 1>}, {transform_indices = @transform_5, window_bounds = array<i64: 8, 1>}]} {
    %c0 = arith.constant 0 : index
    %c0_0 = arith.constant 0 : index
    %0 = vector.load %arg1[%c0, %c0_0] : memref<128x128xf32, #tpu.memory_space<vmem>>, vector<128x128xf32>
    %c0_1 = arith.constant 0 : index
    %c0_2 = arith.constant 0 : index
    %1 = vector.load %arg2[%c0_1, %c0_2] : memref<128x360xf32, #tpu.memory_space<vmem>>, vector<128x360xf32>
    %cst = arith.constant dense<0.000000e+00> : vector<128x360xf32>
    %2 = tpu.matmul %0, %1, %cst {dimension_numbers = #tpu.dot_dimension_numbers<[1], [0], [0], [1], [0, 0, 1, 1], [], []>} : vector<128x128xf32>, vector<128x360xf32>, vector<128x360xf32> -> vector<128x360xf32>
    %3 = vector.shape_cast %2 : vector<128x360xf32> to vector<8x16x360xf32>
    %4 = vector.extract_strided_slice %3 {offsets = [0, 0, 0], sizes = [8, 14, 30], strides = [1, 1, 1]} : vector<8x16x360xf32> to vector<8x14x30xf32>
    %5 = vector.extract_strided_slice %3 {offsets = [0, 1, 30], sizes = [8, 14, 30], strides = [1, 1, 1]} : vector<8x16x360xf32> to vector<8x14x30xf32>
    %6 = arith.addf %4, %5 : vector<8x14x30xf32>
    %7 = vector.extract_strided_slice %3 {offsets = [0, 2, 60], sizes = [8, 14, 30], strides = [1, 1, 1]} : vector<8x16x360xf32> to vector<8x14x30xf32>
    %8 = arith.addf %6, %7 : vector<8x14x30xf32>
    %cst_3 = arith.constant dense<0xFF800000> : vector<8x30xf32>
    %9 = vector.multi_reduction <maximumf>, %8, %cst_3 [1] : vector<8x14x30xf32> to vector<8x30xf32>
    %10 = vector.extract_strided_slice %3 {offsets = [0, 0, 90], sizes = [8, 13, 30], strides = [1, 1, 1]} : vector<8x16x360xf32> to vector<8x13x30xf32>
    %11 = vector.extract_strided_slice %3 {offsets = [0, 1, 120], sizes = [8, 13, 30], strides = [1, 1, 1]} : vector<8x16x360xf32> to vector<8x13x30xf32>
    %12 = arith.addf %10, %11 : vector<8x13x30xf32>
    %13 = vector.extract_strided_slice %3 {offsets = [0, 2, 150], sizes = [8, 13, 30], strides = [1, 1, 1]} : vector<8x16x360xf32> to vector<8x13x30xf32>
    %14 = arith.addf %12, %13 : vector<8x13x30xf32>
    %15 = vector.extract_strided_slice %3 {offsets = [0, 3, 180], sizes = [8, 13, 30], strides = [1, 1, 1]} : vector<8x16x360xf32> to vector<8x13x30xf32>
    %16 = arith.addf %14, %15 : vector<8x13x30xf32>
    %cst_4 = arith.constant dense<0xFF800000> : vector<8x30xf32>
    %17 = vector.multi_reduction <maximumf>, %16, %cst_4 [1] : vector<8x13x30xf32> to vector<8x30xf32>
    %18 = vector.extract_strided_slice %3 {offsets = [0, 0, 210], sizes = [8, 12, 30], strides = [1, 1, 1]} : vector<8x16x360xf32> to vector<8x12x30xf32>
    %19 = vector.extract_strided_slice %3 {offsets = [0, 1, 240], sizes = [8, 12, 30], strides = [1, 1, 1]} : vector<8x16x360xf32> to vector<8x12x30xf32>
    %20 = arith.addf %18, %19 : vector<8x12x30xf32>
    %21 = vector.extract_strided_slice %3 {offsets = [0, 2, 270], sizes = [8, 12, 30], strides = [1, 1, 1]} : vector<8x16x360xf32> to vector<8x12x30xf32>
    %22 = arith.addf %20, %21 : vector<8x12x30xf32>
    %23 = vector.extract_strided_slice %3 {offsets = [0, 3, 300], sizes = [8, 12, 30], strides = [1, 1, 1]} : vector<8x16x360xf32> to vector<8x12x30xf32>
    %24 = arith.addf %22, %23 : vector<8x12x30xf32>
    %25 = vector.extract_strided_slice %3 {offsets = [0, 4, 330], sizes = [8, 12, 30], strides = [1, 1, 1]} : vector<8x16x360xf32> to vector<8x12x30xf32>
    %26 = arith.addf %24, %25 : vector<8x12x30xf32>
    %cst_5 = arith.constant dense<0xFF800000> : vector<8x30xf32>
    %27 = vector.multi_reduction <maximumf>, %26, %cst_5 [1] : vector<8x12x30xf32> to vector<8x30xf32>
    %28 = tpu.concatenate %9, %17, %27 in 1 : vector<8x30xf32>, vector<8x30xf32>, vector<8x30xf32> -> vector<8x90xf32>
    %c0_6 = arith.constant 0 : index
    %c0_7 = arith.constant 0 : index
    %29 = vector.load %arg3[%c0_6, %c0_7] : memref<1x90xf32, #tpu.memory_space<vmem>>, vector<1x90xf32>
    %30 = vector.broadcast %29 : vector<1x90xf32> to vector<8x90xf32>
    %31 = arith.addf %28, %30 : vector<8x90xf32>
    %cst_8 = arith.constant 0.000000e+00 : f32
    %32 = vector.broadcast %cst_8 : f32 to vector<8x90xf32>
    %33 = arith.maximumf %31, %32 : vector<8x90xf32>
    %c0_9 = arith.constant 0 : index
    %c0_10 = arith.constant 0 : index
    %34 = vector.load %arg4[%c0_9, %c0_10] : memref<1x90xf32, #tpu.memory_space<vmem>>, vector<1x90xf32>
    %35 = vector.broadcast %34 : vector<1x90xf32> to vector<8x90xf32>
    %36 = arith.mulf %33, %35 : vector<8x90xf32>
    %cst_11 = arith.constant dense<0.000000e+00> : vector<8xf32>
    %37 = vector.multi_reduction <add>, %36, %cst_11 [1] : vector<8x90xf32> to vector<8xf32>
    %38 = vector.shape_cast %37 : vector<8xf32> to vector<8x1xf32>
    %c0_12 = arith.constant 0 : index
    %c0_13 = arith.constant 0 : index
    %39 = vector.load %arg5[%c0_12, %c0_13] : memref<1x1xf32, #tpu.memory_space<vmem>>, vector<1x1xf32>
    %40 = vector.broadcast %39 : vector<1x1xf32> to vector<8x1xf32>
    %41 = arith.addf %38, %40 : vector<8x1xf32>
    %c0_14 = arith.constant 0 : index
    %c0_15 = arith.constant 0 : index
    %42 = vector.load %arg6[%c0_14, %c0_15] : memref<8x1xf32, #tpu.memory_space<vmem>>, vector<8x1xf32>
    tpu.vector_store %arg6[%c0_14, %c0_15], %41 {strides = array<i32>} : memref<8x1xf32, #tpu.memory_space<vmem>>, vector<8x1xf32>,
    return
  }
  func.func @transform_0(%arg0: i32) -> (i32, i32) {
    %c0_i32 = arith.constant 0 : i32
    %c0_i32_0 = arith.constant 0 : i32
    return %arg0, %c0_i32 : i32, i32
  }
  func.func @transform_1(%arg0: i32) -> (i32, i32) {
    %c0_i32 = arith.constant 0 : i32
    %c0_i32_0 = arith.constant 0 : i32
    %c0_i32_1 = arith.constant 0 : i32
    return %c0_i32, %c0_i32_0 : i32, i32
  }
  func.func @transform_2(%arg0: i32) -> (i32, i32) {
    %c0_i32 = arith.constant 0 : i32
    %c0_i32_0 = arith.constant 0 : i32
    %c0_i32_1 = arith.constant 0 : i32
    return %c0_i32, %c0_i32_0 : i32, i32
  }
  func.func @transform_3(%arg0: i32) -> (i32, i32) {
    %c0_i32 = arith.constant 0 : i32
    %c0_i32_0 = arith.constant 0 : i32
    %c0_i32_1 = arith.constant 0 : i32
    return %c0_i32, %c0_i32_0 : i32, i32
  }
  func.func @transform_4(%arg0: i32) -> (i32, i32) {
    %c0_i32 = arith.constant 0 : i32
    %c0_i32_0 = arith.constant 0 : i32
    %c0_i32_1 = arith.constant 0 : i32
    return %c0_i32, %c0_i32_0 : i32, i32
  }
  func.func @transform_5(%arg0: i32) -> (i32, i32) {
    %c0_i32 = arith.constant 0 : i32
    %c0_i32_0 = arith.constant 0 : i32
    return %arg0, %c0_i32 : i32, i32
  }
}

</mosaic_0001>

<llo_original>
// kernel: tpu_custom_call.1
$region0: #{tpu_custom_call.1}
  #allocation0 [shape = 'u32[]', space=smem, size = 0x4, offset = 0x4, fixed_abs, tag = 'smem constant byte address 0x4 - core index']
  #allocation1 [shape = 'u32[72,128]{1,0:T(1,128)}', space=vmem, size = 0x9000, scoped, tag = 'internal scratch']
  #allocation2 [shape = 'f32[1,1]{1,0:T(1,128)S(1)}', space=vmem, size = 0x200, scoped, tag = 'scoped memory for tpu_custom_call.1']
  %s0 = inlined_call_operand.vmem [shape: f32[256,128], index: 0, kind: input, shape index: {}]
  %s1 = inlined_call_operand.vmem [shape: f32[128,360], index: 1, kind: input, shape index: {}]
  %s2 = inlined_call_operand.vmem [shape: f32[1,90], index: 2, kind: input, shape index: {}]
  %s3 = inlined_call_operand.vmem [shape: f32[1,90], index: 3, kind: input, shape index: {}]
  %s4 = inlined_call_operand.<no memory space> [shape: f32[1,1], index: 4, kind: input, shape index: {}]
  %s5 = inlined_call_operand.vmem [shape: f32[16,1], index: 5, kind: output, shape index: {}]
  %s6 = sld [smem:[#allocation0]]
  $region53: #{tpu_custom_call.1} parent=0
    _
  %s8 = ssub.s32 1, %s6
  %s9 = scalar_select 0, %s8, %s6
  %v10 = vstv %s4
  %11 = vst [vmem:[#allocation2] sm:$0x1] %v10
  loop: start=0, step=1, limit=4
  $region2: #{tpu_custom_call.1} parent=0 // loop_pre_header
    _
  $region3: #{tpu_custom_call.1} parent=0 // loop_header
    %s13 = sphi 0, %s17
    %p14 = scmp.ge.s32.totalorder %s13, 4
    %s23 = sphi 0, %s25
    %s26 = sphi 0, %s23
    %s27 = sphi 0, %s26
    %s43 = sphi 0, %s27
    %s47 = sphi 0, %s47
    %s49 = sphi 0, %s47
    %s50 = sphi 0, %s49
    %s64 = sphi 0, %s50
    %s68 = sphi 0, %s68
    %s70 = sphi 0, %s68
    %s71 = sphi 0, %s70
    %s85 = sphi 0, %s71
    %s89 = sphi 0, %s89
    %s91 = sphi 0, %s89
    %s92 = sphi 0, %s91
    %s106 = sphi 0, %s92
    %s110 = sphi 0, %s110
    %s112 = sphi 0, %s110
    %s113 = sphi 0, %s112
    %s127 = sphi 0, %s113
    %s133 = sphi 0, %s135
    %s136 = sphi 0, %s133
    %s137 = sphi 0, %s136
    %s153 = sphi 0, %s137
  $region4: #{tpu_custom_call.1} parent=0 // loop_header_branch
    %16 = sbr.rel (%p14) target = $region8
  $region5: #{tpu_custom_call.1} parent=0 // loop_body
    %s18 = ssub.s32 %s13, 1
    %s19 = ssub.s32 %s13, 2
    %s20 = sadd.s32 %s13, 1
    %s21 = ssub.s32 %s13, %s20
    %p22 = scmp.eq.s32.totalorder %s21, 0
    %s24 = sadd.s32 %s23, 1
    %s25 = scalar_select %p22, %s23, %s24
    %p28 = pneg %p22
    %p29 = scmp.eq.s32.totalorder %s13, 1
    %p30 = por %p28, %p29
    %p31 = scmp.ne.s32.totalorder %s23, %s26
    %p32 = scmp.eq.s32.totalorder %s13, 0
    %p33 = por %p31, %p32
    %p34 = scmp.ne.s32.totalorder %s23, %s26
    %p35 = scmp.eq.s32.totalorder %s18, 1
    %p36 = por %p34, %p35
    %p37 = scmp.ne.s32.totalorder %s26, %s27
    %p38 = scmp.eq.s32.totalorder %s18, 0
    %p39 = por %p37, %p38
    %p40 = scmp.ne.s32.totalorder %s26, %s27
    %p41 = scmp.eq.s32.totalorder %s19, 1
    %p42 = por %p40, %p41
    %p44 = scmp.ne.s32.totalorder %s27, %s43
    %p45 = scmp.eq.s32.totalorder %s19, 0
    %p46 = por %p44, %p45
    %s48 = sadd.s32 %s47, 1
    %p51 = scmp.eq.s32.totalorder %s13, 1
    %p52 = scmp.ne.s32.totalorder %s47, %s49
    %p53 = scmp.eq.s32.totalorder %s13, 0
    %p54 = por %p52, %p53
    %p55 = scmp.ne.s32.totalorder %s47, %s49
    %p56 = scmp.eq.s32.totalorder %s18, 1
    %p57 = por %p55, %p56
    %p58 = scmp.ne.s32.totalorder %s49, %s50
    %p59 = scmp.eq.s32.totalorder %s18, 0
    %p60 = por %p58, %p59
    %p61 = scmp.ne.s32.totalorder %s49, %s50
    %p62 = scmp.eq.s32.totalorder %s19, 1
    %p63 = por %p61, %p62
    %p65 = scmp.ne.s32.totalorder %s50, %s64
    %p66 = scmp.eq.s32.totalorder %s19, 0
    %p67 = por %p65, %p66
    %s69 = sadd.s32 %s68, 1
    %p72 = scmp.eq.s32.totalorder %s13, 1
    %p73 = scmp.ne.s32.totalorder %s68, %s70
    %p74 = scmp.eq.s32.totalorder %s13, 0
    %p75 = por %p73, %p74
    %p76 = scmp.ne.s32.totalorder %s68, %s70
    %p77 = scmp.eq.s32.totalorder %s18, 1
    %p78 = por %p76, %p77
    %p79 = scmp.ne.s32.totalorder %s70, %s71
    %p80 = scmp.eq.s32.totalorder %s18, 0
    %p81 = por %p79, %p80
    %p82 = scmp.ne.s32.totalorder %s70, %s71
    %p83 = scmp.eq.s32.totalorder %s19, 1
    %p84 = por %p82, %p83
    %p86 = scmp.ne.s32.totalorder %s71, %s85
    %p87 = scmp.eq.s32.totalorder %s19, 0
    %p88 = por %p86, %p87
    %s90 = sadd.s32 %s89, 1
    %p93 = scmp.eq.s32.totalorder %s13, 1
    %p94 = scmp.ne.s32.totalorder %s89, %s91
    %p95 = scmp.eq.s32.totalorder %s13, 0
    %p96 = por %p94, %p95
    %p97 = scmp.ne.s32.totalorder %s89, %s91
    %p98 = scmp.eq.s32.totalorder %s18, 1
    %p99 = por %p97, %p98
    %p100 = scmp.ne.s32.totalorder %s91, %s92
    %p101 = scmp.eq.s32.totalorder %s18, 0
    %p102 = por %p100, %p101
    %p103 = scmp.ne.s32.totalorder %s91, %s92
    %p104 = scmp.eq.s32.totalorder %s19, 1
    %p105 = por %p103, %p104
    %p107 = scmp.ne.s32.totalorder %s92, %s106
    %p108 = scmp.eq.s32.totalorder %s19, 0
    %p109 = por %p107, %p108
    %s111 = sadd.s32 %s110, 1
    %p114 = scmp.eq.s32.totalorder %s13, 1
    %p115 = scmp.ne.s32.totalorder %s110, %s112
    %p116 = scmp.eq.s32.totalorder %s13, 0
    %p117 = por %p115, %p116
    %p118 = scmp.ne.s32.totalorder %s110, %s112
    %p119 = scmp.eq.s32.totalorder %s18, 1
    %p120 = por %p118, %p119
    %p121 = scmp.ne.s32.totalorder %s112, %s113
    %p122 = scmp.eq.s32.totalorder %s18, 0
    %p123 = por %p121, %p122
    %p124 = scmp.ne.s32.totalorder %s112, %s113
    %p125 = scmp.eq.s32.totalorder %s19, 1
    %p126 = por %p124, %p125
    %p128 = scmp.ne.s32.totalorder %s113, %s127
    %p129 = scmp.eq.s32.totalorder %s19, 0
    %p130 = por %p128, %p129
    %s131 = ssub.s32 %s13, %s20
    %p132 = scmp.eq.s32.totalorder %s131, 0
    %s134 = sadd.s32 %s133, 1
    %s135 = scalar_select %p132, %s133, %s134
    %p138 = pneg %p132
    %p139 = scmp.eq.s32.totalorder %s13, 1
    %p140 = por %p138, %p139
    %p141 = scmp.ne.s32.totalorder %s133, %s136
    %p142 = scmp.eq.s32.totalorder %s13, 0
    %p143 = por %p141, %p142
    %p144 = scmp.ne.s32.totalorder %s133, %s136
    %p145 = scmp.eq.s32.totalorder %s18, 1
    %p146 = por %p144, %p145
    %p147 = scmp.ne.s32.totalorder %s136, %s137
    %p148 = scmp.eq.s32.totalorder %s18, 0
    %p149 = por %p147, %p148
    %p150 = scmp.ne.s32.totalorder %s136, %s137
    %p151 = scmp.eq.s32.totalorder %s19, 1
    %p152 = por %p150, %p151
    %p154 = scmp.ne.s32.totalorder %s137, %s153
    %p155 = scmp.eq.s32.totalorder %s19, 0
    %p156 = por %p154, %p155
    %p157 = scmp.le.s32.totalorder 1, %s13
    %p158 = scmp.lt.s32.totalorder %s13, 3
    %p159 = pnand %p157, %p158
    %p160 = pneg %p159
    // Predicated region
    $region9: #{tpu_custom_call.1} parent=5 // pred_check
      _
    $region10: #{tpu_custom_call.1} parent=5 // pred_check_branch
      %162 = sbr.rel (%p159) target = $region12
    $region11: #{tpu_custom_call.1} parent=5 // pred_region
      %s163 = ssub.s32 %s13, 1
      // Predicated region
      $region13: #{tpu_custom_call.1} parent=11 // pred_check
        %p164 = pneg %p60
      $region14: #{tpu_custom_call.1} parent=11 // pred_check_branch
        %166 = sbr.rel (%p164) target = $region16
      $region15: #{tpu_custom_call.1} parent=11 // pred_region
        _
      $region16: #{tpu_custom_call.1} parent=11 // pred_fallthru
        _
      // Predicated region
      $region17: #{tpu_custom_call.1} parent=11 // pred_check
        %p167 = pneg %p81
      $region18: #{tpu_custom_call.1} parent=11 // pred_check_branch
        %169 = sbr.rel (%p167) target = $region20
      $region19: #{tpu_custom_call.1} parent=11 // pred_region
        _
      $region20: #{tpu_custom_call.1} parent=11 // pred_fallthru
        _
      // Predicated region
      $region21: #{tpu_custom_call.1} parent=11 // pred_check
        %p170 = pneg %p102
      $region22: #{tpu_custom_call.1} parent=11 // pred_check_branch
        %172 = sbr.rel (%p170) target = $region24
      $region23: #{tpu_custom_call.1} parent=11 // pred_region
        _
      $region24: #{tpu_custom_call.1} parent=11 // pred_fallthru
        _
      // Predicated region
      $region25: #{tpu_custom_call.1} parent=11 // pred_check
        %p173 = pneg %p123
      $region26: #{tpu_custom_call.1} parent=11 // pred_check_branch
        %175 = sbr.rel (%p173) target = $region28
      $region27: #{tpu_custom_call.1} parent=11 // pred_region
        _
      $region28: #{tpu_custom_call.1} parent=11 // pred_fallthru
        _
    $region12: #{tpu_custom_call.1} parent=5 // pred_fallthru
      _
    %p176 = scmp.lt.s32.totalorder %s13, 2
    // Predicated region
    $region29: #{tpu_custom_call.1} parent=5 // pred_check
      %p177 = pneg %p176
    $region30: #{tpu_custom_call.1} parent=5 // pred_check_branch
      %179 = sbr.rel (%p177) target = $region32
    $region31: #{tpu_custom_call.1} parent=5 // pred_region
      // Predicated region
      $region33: #{tpu_custom_call.1} parent=31 // pred_check
        %p180 = pneg %p33
      $region34: #{tpu_custom_call.1} parent=31 // pred_check_branch
        %182 = sbr.rel (%p180) target = $region36
      $region35: #{tpu_custom_call.1} parent=31 // pred_region
        %s183 = smul.u32 16, %s13
        %p184 = scmp.lt.s32.totalorder %s183, 31
        %s185 = scalar_select %p184, %s183, 31
        %s186 = smul.addr %s185, 8
        %s187 = scalar_lea.vmem %s0, %s186
        %s188 = smul.u32 16, %s13
      $region36: #{tpu_custom_call.1} parent=31 // pred_fallthru
        _
    $region32: #{tpu_custom_call.1} parent=5 // pred_fallthru
      _
    %p189 = scmp.le.s32.totalorder 1, %s13
    %p190 = scmp.lt.s32.totalorder %s13, 3
    %p191 = pnand %p189, %p190
    %p192 = pneg %p191
    // Predicated region
    $region37: #{tpu_custom_call.1} parent=5 // pred_check
      _
    $region38: #{tpu_custom_call.1} parent=5 // pred_check_branch
      %194 = sbr.rel (%p191) target = $region40
    $region39: #{tpu_custom_call.1} parent=5 // pred_region
      %s195 = ssub.s32 %s13, 1
      %s196 = smul.u32 16, %s18
      %p197 = scmp.lt.s32.totalorder %s196, 31
      %s198 = scalar_select %p197, %s196, 31
      %s199 = smul.addr %s198, 8
      %s200 = scalar_lea.vmem %s0, %s199
      %p201 = pneg %p39
      %p202 = pneg %p36
      %p203 = pneg %p60
      %p204 = pneg %p57
      %p205 = pneg %p81
      %p206 = pneg %p78
      %p207 = pneg %p102
      %p208 = pneg %p99
      %p209 = pneg %p123
      %p210 = pneg %p120
      %p211 = pneg %p149
      %p212 = pneg %p146
      %p213 = scmp.lt.s32.totalorder %s18, 1
      %s214 = scalar_select %p213, %s18, 1
      %s215 = smul.addr %s214, 8
      %s216 = scalar_lea.vmem %s5, %s215
      %s217 = smul.u32 16, %s18
      %p218 = scmp.lt.s32.totalorder %s217, 31
      %s219 = scalar_select %p218, %s217, 31
      %s220 = smul.addr %s219, 8
      %s221 = scalar_lea.vmem %s0, %s220
      %s222 = smul.u32 16, %s18
      %p223 = scmp.lt.s32.totalorder %s18, 1
      %s224 = scalar_select %p223, %s18, 1
      %s225 = smul.addr %s224, 8
      %s226 = scalar_lea.vmem %s5, %s225
      %v227 = vld [vmem:[%s221] sm:$0xff]
      %v228 = vld [vmem:[%s221 + $0x8] sm:$0xff]
      %v229 = vld [vmem:[%s221 + $0x10] sm:$0xff]
      %v230 = vld [vmem:[%s221 + $0x18] sm:$0xff]
      %v231 = vld [vmem:[%s221 + $0x20] sm:$0xff]
      %v232 = vld [vmem:[%s221 + $0x28] sm:$0xff]
      %v233 = vld [vmem:[%s221 + $0x30] sm:$0xff]
      %v234 = vld [vmem:[%s221 + $0x38] sm:$0xff]
      %v235 = vld [vmem:[%s221 + $0x40] sm:$0xff]
      %v236 = vld [vmem:[%s221 + $0x48] sm:$0xff]
      %v237 = vld [vmem:[%s221 + $0x50] sm:$0xff]
      %v238 = vld [vmem:[%s221 + $0x58] sm:$0xff]
      %v239 = vld [vmem:[%s221 + $0x60] sm:$0xff]
      %v240 = vld [vmem:[%s221 + $0x68] sm:$0xff]
      %v241 = vld [vmem:[%s221 + $0x70] sm:$0xff]
      %v242 = vld [vmem:[%s221 + $0x78] sm:$0xff]
      %v243 = vld [vmem:[%s1] sm:$0xff]
      %v244 = vld [vmem:[%s1 + $0x8] sm:$0xff]
      %v245 = vld [vmem:[%s1 + $0x10] sm:$0xff]
      %v246 = vld [vmem:[%s1 + $0x18] sm:$0xff]
      %v247 = vld [vmem:[%s1 + $0x20] sm:$0xff]
      %v248 = vld [vmem:[%s1 + $0x28] sm:$0xff]
      %v249 = vld [vmem:[%s1 + $0x30] sm:$0xff]
      %v250 = vld [vmem:[%s1 + $0x38] sm:$0xff]
      %v251 = vld [vmem:[%s1 + $0x40] sm:$0xff]
      %v252 = vld [vmem:[%s1 + $0x48] sm:$0xff]
      %v253 = vld [vmem:[%s1 + $0x50] sm:$0xff]
      %v254 = vld [vmem:[%s1 + $0x58] sm:$0xff]
      %v255 = vld [vmem:[%s1 + $0x60] sm:$0xff]
      %v256 = vld [vmem:[%s1 + $0x68] sm:$0xff]
      %v257 = vld [vmem:[%s1 + $0x70] sm:$0xff]
      %v258 = vld [vmem:[%s1 + $0x78] sm:$0xff]
      %v259 = vld [vmem:[%s1 + $0x80] sm:$0xff]
      %v260 = vld [vmem:[%s1 + $0x88] sm:$0xff]
      %v261 = vld [vmem:[%s1 + $0x90] sm:$0xff]
      %v262 = vld [vmem:[%s1 + $0x98] sm:$0xff]
      %v263 = vld [vmem:[%s1 + $0xa0] sm:$0xff]
      %v264 = vld [vmem:[%s1 + $0xa8] sm:$0xff]
      %v265 = vld [vmem:[%s1 + $0xb0] sm:$0xff]
      %v266 = vld [vmem:[%s1 + $0xb8] sm:$0xff]
      %v267 = vld [vmem:[%s1 + $0xc0] sm:$0xff]
      %v268 = vld [vmem:[%s1 + $0xc8] sm:$0xff]
      %v269 = vld [vmem:[%s1 + $0xd0] sm:$0xff]
      %v270 = vld [vmem:[%s1 + $0xd8] sm:$0xff]
      %v271 = vld [vmem:[%s1 + $0xe0] sm:$0xff]
      %v272 = vld [vmem:[%s1 + $0xe8] sm:$0xff]
      %v273 = vld [vmem:[%s1 + $0xf0] sm:$0xff]
      %v274 = vld [vmem:[%s1 + $0xf8] sm:$0xff]
      %v275 = vld [vmem:[%s1 + $0x100] sm:$0xff]
      %v276 = vld [vmem:[%s1 + $0x108] sm:$0xff]
      %v277 = vld [vmem:[%s1 + $0x110] sm:$0xff]
      %v278 = vld [vmem:[%s1 + $0x118] sm:$0xff]
      %v279 = vld [vmem:[%s1 + $0x120] sm:$0xff]
      %v280 = vld [vmem:[%s1 + $0x128] sm:$0xff]
      %v281 = vld [vmem:[%s1 + $0x130] sm:$0xff]
      %v282 = vld [vmem:[%s1 + $0x138] sm:$0xff]
      %v283 = vld [vmem:[%s1 + $0x140] sm:$0xff]
      %v284 = vld [vmem:[%s1 + $0x148] sm:$0xff]
      %v285 = vld [vmem:[%s1 + $0x150] sm:$0xff]
      %v286 = vld [vmem:[%s1 + $0x158] sm:$0xff]
      %v287 = vld [vmem:[%s1 + $0x160] sm:$0xff]
      %v288 = vld [vmem:[%s1 + $0x168] sm:$0xff]
      %v289 = vld [vmem:[%s1 + $0x170] sm:$0xff]
      %v290 = vld [vmem:[%s1 + $0x178] sm:$0xff]
      %291 = vmatpush.msra.mxu0 %v288
      %292 = vmatpush.msra.mxu0 %v285
      %293 = vmatpush.msra.mxu0 %v282
      %294 = vmatpush.msra.mxu0 %v279
      %295 = vmatpush.msra.mxu0 %v276
      %296 = vmatpush.msra.mxu0 %v273
      %297 = vmatpush.msra.mxu0 %v270
      %298 = vmatpush.msra.mxu0 %v267
      %299 = vmatpush.msra.mxu0 %v264
      %300 = vmatpush.msra.mxu0 %v261
      %301 = vmatpush.msra.mxu0 %v258
      %302 = vmatpush.msra.mxu0 %v255
      %303 = vmatpush.msra.mxu0 %v252
      %304 = vmatpush.msra.mxu0 %v249
      %305 = vmatpush.msra.mxu0 %v246
      %306 = vmatpush.msra.mxu0 %v243
      %307 = vmatmul.f32.gmra.mxu0 %v227
      %v308 = vpop.f32.mrf.mxu0
      %v309 = vadd.f32 0.0, %v308
      %310 = vmatmul.f32.gmra.mxu0 %v228
      %v311 = vpop.f32.mrf.mxu0
      %v312 = vadd.f32 0.0, %v311
      %313 = vmatmul.f32.gmra.mxu0 %v229
      %v314 = vpop.f32.mrf.mxu0
      %v315 = vadd.f32 0.0, %v314
      %316 = vmatmul.f32.gmra.mxu0 %v230
      %v317 = vpop.f32.mrf.mxu0
      %v318 = vadd.f32 0.0, %v317
      %319 = vmatmul.f32.gmra.mxu0 %v231
      %v320 = vpop.f32.mrf.mxu0
      %v321 = vadd.f32 0.0, %v320
      %322 = vmatmul.f32.gmra.mxu0 %v232
      %v323 = vpop.f32.mrf.mxu0
      %v324 = vadd.f32 0.0, %v323
      %325 = vmatmul.f32.gmra.mxu0 %v233
      %v326 = vpop.f32.mrf.mxu0
      %v327 = vadd.f32 0.0, %v326
      %328 = vmatmul.f32.gmra.mxu0 %v234
      %v329 = vpop.f32.mrf.mxu0
      %v330 = vadd.f32 0.0, %v329
      %331 = vmatmul.f32.gmra.mxu0 %v235
      %v332 = vpop.f32.mrf.mxu0
      %v333 = vadd.f32 0.0, %v332
      %334 = vmatmul.f32.gmra.mxu0 %v236
      %v335 = vpop.f32.mrf.mxu0
      %v336 = vadd.f32 0.0, %v335
      %337 = vmatmul.f32.gmra.mxu0 %v237
      %v338 = vpop.f32.mrf.mxu0
      %v339 = vadd.f32 0.0, %v338
      %340 = vmatmul.f32.gmra.mxu0 %v238
      %v341 = vpop.f32.mrf.mxu0
      %v342 = vadd.f32 0.0, %v341
      %343 = vmatmul.f32.gmra.mxu0 %v239
      %v344 = vpop.f32.mrf.mxu0
      %v345 = vadd.f32 0.0, %v344
      %346 = vmatmul.f32.gmra.mxu0 %v240
      %v347 = vpop.f32.mrf.mxu0
      %v348 = vadd.f32 0.0, %v347
      %349 = vmatmul.f32.gmra.mxu0 %v241
      %v350 = vpop.f32.mrf.mxu0
      %v351 = vadd.f32 0.0, %v350
      %352 = vmatmul.f32.gmra.mxu0 %v242
      %v353 = vpop.f32.mrf.mxu0
      %v354 = vadd.f32 0.0, %v353
      %355 = vdwg.mxu0
      %356 = vmatpush.msra.mxu0 %v289
      %357 = vmatpush.msra.mxu0 %v286
      %358 = vmatpush.msra.mxu0 %v283
      %359 = vmatpush.msra.mxu0 %v280
      %360 = vmatpush.msra.mxu0 %v277
      %361 = vmatpush.msra.mxu0 %v274
      %362 = vmatpush.msra.mxu0 %v271
      %363 = vmatpush.msra.mxu0 %v268
      %364 = vmatpush.msra.mxu0 %v265
      %365 = vmatpush.msra.mxu0 %v262
      %366 = vmatpush.msra.mxu0 %v259
      %367 = vmatpush.msra.mxu0 %v256
      %368 = vmatpush.msra.mxu0 %v253
      %369 = vmatpush.msra.mxu0 %v250
      %370 = vmatpush.msra.mxu0 %v247
      %371 = vmatpush.msra.mxu0 %v244
      %372 = vmatmul.f32.gmra.mxu0 %v227
      %v373 = vpop.f32.mrf.mxu0
      %v374 = vadd.f32 0.0, %v373
      %375 = vmatmul.f32.gmra.mxu0 %v228
      %v376 = vpop.f32.mrf.mxu0
      %v377 = vadd.f32 0.0, %v376
      %378 = vmatmul.f32.gmra.mxu0 %v229
      %v379 = vpop.f32.mrf.mxu0
      %v380 = vadd.f32 0.0, %v379
      %381 = vmatmul.f32.gmra.mxu0 %v230
      %v382 = vpop.f32.mrf.mxu0
      %v383 = vadd.f32 0.0, %v382
      %384 = vmatmul.f32.gmra.mxu0 %v231
      %v385 = vpop.f32.mrf.mxu0
      %v386 = vadd.f32 0.0, %v385
      %387 = vmatmul.f32.gmra.mxu0 %v232
      %v388 = vpop.f32.mrf.mxu0
      %v389 = vadd.f32 0.0, %v388
      %390 = vmatmul.f32.gmra.mxu0 %v233
      %v391 = vpop.f32.mrf.mxu0
      %v392 = vadd.f32 0.0, %v391
      %393 = vmatmul.f32.gmra.mxu0 %v234
      %v394 = vpop.f32.mrf.mxu0
      %v395 = vadd.f32 0.0, %v394
      %396 = vmatmul.f32.gmra.mxu0 %v235
      %v397 = vpop.f32.mrf.mxu0
      %v398 = vadd.f32 0.0, %v397
      %399 = vmatmul.f32.gmra.mxu0 %v236
      %v400 = vpop.f32.mrf.mxu0
      %v401 = vadd.f32 0.0, %v400
      %402 = vmatmul.f32.gmra.mxu0 %v237
      %v403 = vpop.f32.mrf.mxu0
      %v404 = vadd.f32 0.0, %v403
      %405 = vmatmul.f32.gmra.mxu0 %v238
      %v406 = vpop.f32.mrf.mxu0
      %v407 = vadd.f32 0.0, %v406
      %408 = vmatmul.f32.gmra.mxu0 %v239
      %v409 = vpop.f32.mrf.mxu0
      %v410 = vadd.f32 0.0, %v409
      %411 = vmatmul.f32.gmra.mxu0 %v240
      %v412 = vpop.f32.mrf.mxu0
      %v413 = vadd.f32 0.0, %v412
      %414 = vmatmul.f32.gmra.mxu0 %v241
      %v415 = vpop.f32.mrf.mxu0
      %v416 = vadd.f32 0.0, %v415
      %417 = vmatmul.f32.gmra.mxu0 %v242
      %v418 = vpop.f32.mrf.mxu0
      %v419 = vadd.f32 0.0, %v418
      %420 = vdwg.mxu0
      %421 = vmatpush.msra.mxu0 %v290
      %422 = vmatpush.msra.mxu0 %v287
      %423 = vmatpush.msra.mxu0 %v284
      %424 = vmatpush.msra.mxu0 %v281
      %425 = vmatpush.msra.mxu0 %v278
      %426 = vmatpush.msra.mxu0 %v275
      %427 = vmatpush.msra.mxu0 %v272
      %428 = vmatpush.msra.mxu0 %v269
      %429 = vmatpush.msra.mxu0 %v266
      %430 = vmatpush.msra.mxu0 %v263
      %431 = vmatpush.msra.mxu0 %v260
      %432 = vmatpush.msra.mxu0 %v257
      %433 = vmatpush.msra.mxu0 %v254
      %434 = vmatpush.msra.mxu0 %v251
      %435 = vmatpush.msra.mxu0 %v248
      %436 = vmatpush.msra.mxu0 %v245
      %437 = vmatmul.f32.gmra.mxu0 %v227
      %v438 = vpop.f32.mrf.mxu0
      %v439 = vadd.f32 0.0, %v438
      %440 = vmatmul.f32.gmra.mxu0 %v228
      %v441 = vpop.f32.mrf.mxu0
      %v442 = vadd.f32 0.0, %v441
      %443 = vmatmul.f32.gmra.mxu0 %v229
      %v444 = vpop.f32.mrf.mxu0
      %v445 = vadd.f32 0.0, %v444
      %446 = vmatmul.f32.gmra.mxu0 %v230
      %v447 = vpop.f32.mrf.mxu0
      %v448 = vadd.f32 0.0, %v447
      %449 = vmatmul.f32.gmra.mxu0 %v231
      %v450 = vpop.f32.mrf.mxu0
      %v451 = vadd.f32 0.0, %v450
      %452 = vmatmul.f32.gmra.mxu0 %v232
      %v453 = vpop.f32.mrf.mxu0
      %v454 = vadd.f32 0.0, %v453
      %455 = vmatmul.f32.gmra.mxu0 %v233
      %v456 = vpop.f32.mrf.mxu0
      %v457 = vadd.f32 0.0, %v456
      %458 = vmatmul.f32.gmra.mxu0 %v234
      %v459 = vpop.f32.mrf.mxu0
      %v460 = vadd.f32 0.0, %v459
      %461 = vmatmul.f32.gmra.mxu0 %v235
      %v462 = vpop.f32.mrf.mxu0
      %v463 = vadd.f32 0.0, %v462
      %464 = vmatmul.f32.gmra.mxu0 %v236
      %v465 = vpop.f32.mrf.mxu0
      %v466 = vadd.f32 0.0, %v465
      %467 = vmatmul.f32.gmra.mxu0 %v237
      %v468 = vpop.f32.mrf.mxu0
      %v469 = vadd.f32 0.0, %v468
      %470 = vmatmul.f32.gmra.mxu0 %v238
      %v471 = vpop.f32.mrf.mxu0
      %v472 = vadd.f32 0.0, %v471
      %473 = vmatmul.f32.gmra.mxu0 %v239
      %v474 = vpop.f32.mrf.mxu0
      %v475 = vadd.f32 0.0, %v474
      %476 = vmatmul.f32.gmra.mxu0 %v240
      %v477 = vpop.f32.mrf.mxu0
      %v478 = vadd.f32 0.0, %v477
      %479 = vmatmul.f32.gmra.mxu0 %v241
      %v480 = vpop.f32.mrf.mxu0
      %v481 = vadd.f32 0.0, %v480
      %482 = vmatmul.f32.gmra.mxu0 %v242
      %v483 = vpop.f32.mrf.mxu0
      %v484 = vadd.f32 0.0, %v483
      %485 = vdwg.mxu0
      %vm502 = vcmask 1046528
      %v503 = vrot.slane %v309, 1
      %v504 = vrot.slane %v312, 1
      %v505 = vsel %vm502, %v503, %v504
      %v506 = vrot.slane %v315, 1
      %v507 = vrot.slane %v318, 1
      %v508 = vsel %vm502, %v506, %v507
      %v509 = vrot.slane %v321, 1
      %v510 = vrot.slane %v324, 1
      %v511 = vsel %vm502, %v509, %v510
      %v512 = vrot.slane %v327, 1
      %v513 = vrot.slane %v330, 1
      %v514 = vsel %vm502, %v512, %v513
      %v515 = vrot.slane %v333, 1
      %v516 = vrot.slane %v336, 1
      %v517 = vsel %vm502, %v515, %v516
      %v518 = vrot.slane %v339, 1
      %v519 = vrot.slane %v342, 1
      %v520 = vsel %vm502, %v518, %v519
      %v521 = vrot.slane %v345, 1
      %v522 = vrot.slane %v348, 1
      %v523 = vsel %vm502, %v521, %v522
      %v524 = vrot.slane %v351, 1
      %v525 = vrot.slane %v354, 1
      %v526 = vsel %vm502, %v524, %v525
      %527 = vrot.lane.b32.xlu0 %v505, 98
      %v528 = vpop.permute.xlu0 %527
      %529 = vrot.lane.b32.xlu0 %v504, 98
      %v530 = vpop.permute.xlu0 %529
      %531 = vrot.lane.b32.xlu0 %v508, 98
      %v532 = vpop.permute.xlu0 %531
      %533 = vrot.lane.b32.xlu0 %v507, 98
      %v534 = vpop.permute.xlu0 %533
      %535 = vrot.lane.b32.xlu0 %v511, 98
      %v536 = vpop.permute.xlu0 %535
      %537 = vrot.lane.b32.xlu0 %v510, 98
      %v538 = vpop.permute.xlu0 %537
      %539 = vrot.lane.b32.xlu0 %v514, 98
      %v540 = vpop.permute.xlu0 %539
      %541 = vrot.lane.b32.xlu0 %v513, 98
      %v542 = vpop.permute.xlu0 %541
      %543 = vrot.lane.b32.xlu0 %v517, 98
      %v544 = vpop.permute.xlu0 %543
      %545 = vrot.lane.b32.xlu0 %v516, 98
      %v546 = vpop.permute.xlu0 %545
      %547 = vrot.lane.b32.xlu0 %v520, 98
      %v548 = vpop.permute.xlu0 %547
      %549 = vrot.lane.b32.xlu0 %v519, 98
      %v550 = vpop.permute.xlu0 %549
      %551 = vrot.lane.b32.xlu0 %v523, 98
      %v552 = vpop.permute.xlu0 %551
      %553 = vrot.lane.b32.xlu0 %v522, 98
      %v554 = vpop.permute.xlu0 %553
      %555 = vrot.lane.b32.xlu0 %v526, 98
      %v556 = vpop.permute.xlu0 %555
      %557 = vrot.lane.b32.xlu0 %v525, 98
      %v558 = vpop.permute.xlu0 %557
      %v575 = vadd.f32 %v309, %v528
      %v576 = vadd.f32 %v312, %v530
      %v577 = vadd.f32 %v315, %v532
      %v578 = vadd.f32 %v318, %v534
      %v579 = vadd.f32 %v321, %v536
      %v580 = vadd.f32 %v324, %v538
      %v581 = vadd.f32 %v327, %v540
      %v582 = vadd.f32 %v330, %v542
      %v583 = vadd.f32 %v333, %v544
      %v584 = vadd.f32 %v336, %v546
      %v585 = vadd.f32 %v339, %v548
      %v586 = vadd.f32 %v342, %v550
      %v587 = vadd.f32 %v345, %v552
      %v588 = vadd.f32 %v348, %v554
      %v589 = vadd.f32 %v351, %v556
      %v590 = vadd.f32 %v354, %v558
      %vm591 = vcmask 1045504
      %v592 = vrot.slane %v309, 2
      %v593 = vrot.slane %v312, 2
      %v594 = vsel %vm591, %v592, %v593
      %v595 = vrot.slane %v315, 2
      %v596 = vrot.slane %v318, 2
      %v597 = vsel %vm591, %v595, %v596
      %v598 = vrot.slane %v321, 2
      %v599 = vrot.slane %v324, 2
      %v600 = vsel %vm591, %v598, %v599
      %v601 = vrot.slane %v327, 2
      %v602 = vrot.slane %v330, 2
      %v603 = vsel %vm591, %v601, %v602
      %v604 = vrot.slane %v333, 2
      %v605 = vrot.slane %v336, 2
      %v606 = vsel %vm591, %v604, %v605
      %v607 = vrot.slane %v339, 2
      %v608 = vrot.slane %v342, 2
      %v609 = vsel %vm591, %v607, %v608
      %v610 = vrot.slane %v345, 2
      %v611 = vrot.slane %v348, 2
      %v612 = vsel %vm591, %v610, %v611
      %v613 = vrot.slane %v351, 2
      %v614 = vrot.slane %v354, 2
      %v615 = vsel %vm591, %v613, %v614
      %616 = vrot.lane.b32.xlu0 %v594, 68
      %v617 = vpop.permute.xlu0 %616
      %618 = vrot.lane.b32.xlu0 %v593, 68
      %v619 = vpop.permute.xlu0 %618
      %620 = vrot.lane.b32.xlu0 %v597, 68
      %v621 = vpop.permute.xlu0 %620
      %622 = vrot.lane.b32.xlu0 %v596, 68
      %v623 = vpop.permute.xlu0 %622
      %624 = vrot.lane.b32.xlu0 %v600, 68
      %v625 = vpop.permute.xlu0 %624
      %626 = vrot.lane.b32.xlu0 %v599, 68
      %v627 = vpop.permute.xlu0 %626
      %628 = vrot.lane.b32.xlu0 %v603, 68
      %v629 = vpop.permute.xlu0 %628
      %630 = vrot.lane.b32.xlu0 %v602, 68
      %v631 = vpop.permute.xlu0 %630
      %632 = vrot.lane.b32.xlu0 %v606, 68
      %v633 = vpop.permute.xlu0 %632
      %634 = vrot.lane.b32.xlu0 %v605, 68
      %v635 = vpop.permute.xlu0 %634
      %636 = vrot.lane.b32.xlu0 %v609, 68
      %v637 = vpop.permute.xlu0 %636
      %638 = vrot.lane.b32.xlu0 %v608, 68
      %v639 = vpop.permute.xlu0 %638
      %640 = vrot.lane.b32.xlu0 %v612, 68
      %v641 = vpop.permute.xlu0 %640
      %642 = vrot.lane.b32.xlu0 %v611, 68
      %v643 = vpop.permute.xlu0 %642
      %644 = vrot.lane.b32.xlu0 %v615, 68
      %v645 = vpop.permute.xlu0 %644
      %646 = vrot.lane.b32.xlu0 %v614, 68
      %v647 = vpop.permute.xlu0 %646
      %v664 = vadd.f32 %v575, %v617
      %v665 = vadd.f32 %v576, %v619
      %v666 = vadd.f32 %v577, %v621
      %v667 = vadd.f32 %v578, %v623
      %v668 = vadd.f32 %v579, %v625
      %v669 = vadd.f32 %v580, %v627
      %v670 = vadd.f32 %v581, %v629
      %v671 = vadd.f32 %v582, %v631
      %v672 = vadd.f32 %v583, %v633
      %v673 = vadd.f32 %v584, %v635
      %v674 = vadd.f32 %v585, %v637
      %v675 = vadd.f32 %v586, %v639
      %v676 = vadd.f32 %v587, %v641
      %v677 = vadd.f32 %v588, %v643
      %v678 = vadd.f32 %v589, %v645
      %v679 = vadd.f32 %v590, %v647
      %vm680 = vcmask 244736
      %v681 = vsel %vm680, %v664, -inf
      %vm682 = vcmask 242688
      %v683 = vsel %vm682, %v665, -inf
      %v684 = vmax.f32 %v681, %v683
      %v685 = vrot.slane %v684, 4
      %v686 = vmax.f32 %v684, %v685
      %v687 = vrot.slane %v686, 2
      %v688 = vmax.f32 %v686, %v687
      %v689 = vrot.slane %v688, 1
      %v690 = vmax.f32 %v688, %v689
      %v691 = vsel %vm680, %v666, -inf
      %v692 = vsel %vm682, %v667, -inf
      %v693 = vmax.f32 %v691, %v692
      %v694 = vrot.slane %v693, 4
      %v695 = vmax.f32 %v693, %v694
      %v696 = vrot.slane %v695, 2
      %v697 = vmax.f32 %v695, %v696
      %v698 = vrot.slane %v697, 1
      %v699 = vmax.f32 %v697, %v698
      %v700 = vsel %vm680, %v668, -inf
      %v701 = vsel %vm682, %v669, -inf
      %v702 = vmax.f32 %v700, %v701
      %v703 = vrot.slane %v702, 4
      %v704 = vmax.f32 %v702, %v703
      %v705 = vrot.slane %v704, 2
      %v706 = vmax.f32 %v704, %v705
      %v707 = vrot.slane %v706, 1
      %v708 = vmax.f32 %v706, %v707
      %v709 = vsel %vm680, %v670, -inf
      %v710 = vsel %vm682, %v671, -inf
      %v711 = vmax.f32 %v709, %v710
      %v712 = vrot.slane %v711, 4
      %v713 = vmax.f32 %v711, %v712
      %v714 = vrot.slane %v713, 2
      %v715 = vmax.f32 %v713, %v714
      %v716 = vrot.slane %v715, 1
      %v717 = vmax.f32 %v715, %v716
      %v718 = vsel %vm680, %v672, -inf
      %v719 = vsel %vm682, %v673, -inf
      %v720 = vmax.f32 %v718, %v719
      %v721 = vrot.slane %v720, 4
      %v722 = vmax.f32 %v720, %v721
      %v723 = vrot.slane %v722, 2
      %v724 = vmax.f32 %v722, %v723
      %v725 = vrot.slane %v724, 1
      %v726 = vmax.f32 %v724, %v725
      %v727 = vsel %vm680, %v674, -inf
      %v728 = vsel %vm682, %v675, -inf
      %v729 = vmax.f32 %v727, %v728
      %v730 = vrot.slane %v729, 4
      %v731 = vmax.f32 %v729, %v730
      %v732 = vrot.slane %v731, 2
      %v733 = vmax.f32 %v731, %v732
      %v734 = vrot.slane %v733, 1
      %v735 = vmax.f32 %v733, %v734
      %v736 = vsel %vm680, %v676, -inf
      %v737 = vsel %vm682, %v677, -inf
      %v738 = vmax.f32 %v736, %v737
      %v739 = vrot.slane %v738, 4
      %v740 = vmax.f32 %v738, %v739
      %v741 = vrot.slane %v740, 2
      %v742 = vmax.f32 %v740, %v741
      %v743 = vrot.slane %v742, 1
      %v744 = vmax.f32 %v742, %v743
      %v745 = vsel %vm680, %v678, -inf
      %v746 = vsel %vm682, %v679, -inf
      %v747 = vmax.f32 %v745, %v746
      %v748 = vrot.slane %v747, 4
      %v749 = vmax.f32 %v747, %v748
      %v750 = vrot.slane %v749, 2
      %v751 = vmax.f32 %v749, %v750
      %v752 = vrot.slane %v751, 1
      %v753 = vmax.f32 %v751, %v752
      %v770 = vrot.slane %v374, 1
      %v771 = vrot.slane %v377, 1
      %v772 = vsel %vm502, %v770, %v771
      %v773 = vrot.slane %v380, 1
      %v774 = vrot.slane %v383, 1
      %v775 = vsel %vm502, %v773, %v774
      %v776 = vrot.slane %v386, 1
      %v777 = vrot.slane %v389, 1
      %v778 = vsel %vm502, %v776, %v777
      %v779 = vrot.slane %v392, 1
      %v780 = vrot.slane %v395, 1
      %v781 = vsel %vm502, %v779, %v780
      %v782 = vrot.slane %v398, 1
      %v783 = vrot.slane %v401, 1
      %v784 = vsel %vm502, %v782, %v783
      %v785 = vrot.slane %v404, 1
      %v786 = vrot.slane %v407, 1
      %v787 = vsel %vm502, %v785, %v786
      %v788 = vrot.slane %v410, 1
      %v789 = vrot.slane %v413, 1
      %v790 = vsel %vm502, %v788, %v789
      %v791 = vrot.slane %v416, 1
      %v792 = vrot.slane %v419, 1
      %v793 = vsel %vm502, %v791, %v792
      %794 = vrot.lane.b32.xlu0 %v772, 98
      %v795 = vpop.permute.xlu0 %794
      %796 = vrot.lane.b32.xlu0 %v771, 98
      %v797 = vpop.permute.xlu0 %796
      %798 = vrot.lane.b32.xlu0 %v775, 98
      %v799 = vpop.permute.xlu0 %798
      %800 = vrot.lane.b32.xlu0 %v774, 98
      %v801 = vpop.permute.xlu0 %800
      %802 = vrot.lane.b32.xlu0 %v778, 98
      %v803 = vpop.permute.xlu0 %802
      %804 = vrot.lane.b32.xlu0 %v777, 98
      %v805 = vpop.permute.xlu0 %804
      %806 = vrot.lane.b32.xlu0 %v781, 98
      %v807 = vpop.permute.xlu0 %806
      %808 = vrot.lane.b32.xlu0 %v780, 98
      %v809 = vpop.permute.xlu0 %808
      %810 = vrot.lane.b32.xlu0 %v784, 98
      %v811 = vpop.permute.xlu0 %810
      %812 = vrot.lane.b32.xlu0 %v783, 98
      %v813 = vpop.permute.xlu0 %812
      %814 = vrot.lane.b32.xlu0 %v787, 98
      %v815 = vpop.permute.xlu0 %814
      %816 = vrot.lane.b32.xlu0 %v786, 98
      %v817 = vpop.permute.xlu0 %816
      %818 = vrot.lane.b32.xlu0 %v790, 98
      %v819 = vpop.permute.xlu0 %818
      %820 = vrot.lane.b32.xlu0 %v789, 98
      %v821 = vpop.permute.xlu0 %820
      %822 = vrot.lane.b32.xlu0 %v793, 98
      %v823 = vpop.permute.xlu0 %822
      %824 = vrot.lane.b32.xlu0 %v792, 98
      %v825 = vpop.permute.xlu0 %824
      %vm826 = vcmask 801792
      %v827 = vsel %vm826, %v528, %v795
      %v828 = vsel %vm826, %v530, %v797
      %v829 = vsel %vm826, %v532, %v799
      %v830 = vsel %vm826, %v534, %v801
      %v831 = vsel %vm826, %v536, %v803
      %v832 = vsel %vm826, %v538, %v805
      %v833 = vsel %vm826, %v540, %v807
      %v834 = vsel %vm826, %v542, %v809
      %v835 = vsel %vm826, %v544, %v811
      %v836 = vsel %vm826, %v546, %v813
      %v837 = vsel %vm826, %v548, %v815
      %v838 = vsel %vm826, %v550, %v817
      %v839 = vsel %vm826, %v552, %v819
      %v840 = vsel %vm826, %v554, %v821
      %v841 = vsel %vm826, %v556, %v823
      %v842 = vsel %vm826, %v558, %v825
      %v859 = vadd.f32 %v309, %v827
      %v860 = vadd.f32 %v312, %v828
      %v861 = vadd.f32 %v315, %v829
      %v862 = vadd.f32 %v318, %v830
      %v863 = vadd.f32 %v321, %v831
      %v864 = vadd.f32 %v324, %v832
      %v865 = vadd.f32 %v327, %v833
      %v866 = vadd.f32 %v330, %v834
      %v867 = vadd.f32 %v333, %v835
      %v868 = vadd.f32 %v336, %v836
      %v869 = vadd.f32 %v339, %v837
      %v870 = vadd.f32 %v342, %v838
      %v871 = vadd.f32 %v345, %v839
      %v872 = vadd.f32 %v348, %v840
      %v873 = vadd.f32 %v351, %v841
      %v874 = vadd.f32 %v354, %v842
      %v875 = vrot.slane %v374, 2
      %v876 = vrot.slane %v377, 2
      %v877 = vsel %vm591, %v875, %v876
      %v878 = vrot.slane %v380, 2
      %v879 = vrot.slane %v383, 2
      %v880 = vsel %vm591, %v878, %v879
      %v881 = vrot.slane %v386, 2
      %v882 = vrot.slane %v389, 2
      %v883 = vsel %vm591, %v881, %v882
      %v884 = vrot.slane %v392, 2
      %v885 = vrot.slane %v395, 2
      %v886 = vsel %vm591, %v884, %v885
      %v887 = vrot.slane %v398, 2
      %v888 = vrot.slane %v401, 2
      %v889 = vsel %vm591, %v887, %v888
      %v890 = vrot.slane %v404, 2
      %v891 = vrot.slane %v407, 2
      %v892 = vsel %vm591, %v890, %v891
      %v893 = vrot.slane %v410, 2
      %v894 = vrot.slane %v413, 2
      %v895 = vsel %vm591, %v893, %v894
      %v896 = vrot.slane %v416, 2
      %v897 = vrot.slane %v419, 2
      %v898 = vsel %vm591, %v896, %v897
      %899 = vrot.lane.b32.xlu0 %v877, 68
      %v900 = vpop.permute.xlu0 %899
      %901 = vrot.lane.b32.xlu0 %v876, 68
      %v902 = vpop.permute.xlu0 %901
      %903 = vrot.lane.b32.xlu0 %v880, 68
      %v904 = vpop.permute.xlu0 %903
      %905 = vrot.lane.b32.xlu0 %v879, 68
      %v906 = vpop.permute.xlu0 %905
      %907 = vrot.lane.b32.xlu0 %v883, 68
      %v908 = vpop.permute.xlu0 %907
      %909 = vrot.lane.b32.xlu0 %v882, 68
      %v910 = vpop.permute.xlu0 %909
      %911 = vrot.lane.b32.xlu0 %v886, 68
      %v912 = vpop.permute.xlu0 %911
      %913 = vrot.lane.b32.xlu0 %v885, 68
      %v914 = vpop.permute.xlu0 %913
      %915 = vrot.lane.b32.xlu0 %v889, 68
      %v916 = vpop.permute.xlu0 %915
      %917 = vrot.lane.b32.xlu0 %v888, 68
      %v918 = vpop.permute.xlu0 %917
      %919 = vrot.lane.b32.xlu0 %v892, 68
      %v920 = vpop.permute.xlu0 %919
      %921 = vrot.lane.b32.xlu0 %v891, 68
      %v922 = vpop.permute.xlu0 %921
      %923 = vrot.lane.b32.xlu0 %v895, 68
      %v924 = vpop.permute.xlu0 %923
      %925 = vrot.lane.b32.xlu0 %v894, 68
      %v926 = vpop.permute.xlu0 %925
      %927 = vrot.lane.b32.xlu0 %v898, 68
      %v928 = vpop.permute.xlu0 %927
      %929 = vrot.lane.b32.xlu0 %v897, 68
      %v930 = vpop.permute.xlu0 %929
      %v947 = vadd.f32 %v859, %v900
      %v948 = vadd.f32 %v860, %v902
      %v949 = vadd.f32 %v861, %v904
      %v950 = vadd.f32 %v862, %v906
      %v951 = vadd.f32 %v863, %v908
      %v952 = vadd.f32 %v864, %v910
      %v953 = vadd.f32 %v865, %v912
      %v954 = vadd.f32 %v866, %v914
      %v955 = vadd.f32 %v867, %v916
      %v956 = vadd.f32 %v868, %v918
      %v957 = vadd.f32 %v869, %v920
      %v958 = vadd.f32 %v870, %v922
      %v959 = vadd.f32 %v871, %v924
      %v960 = vadd.f32 %v872, %v926
      %v961 = vadd.f32 %v873, %v928
      %v962 = vadd.f32 %v874, %v930
      %vm963 = vcmask 1044480
      %v964 = vrot.slane %v374, 3
      %v965 = vrot.slane %v377, 3
      %v966 = vsel %vm963, %v964, %v965
      %v967 = vrot.slane %v380, 3
      %v968 = vrot.slane %v383, 3
      %v969 = vsel %vm963, %v967, %v968
      %v970 = vrot.slane %v386, 3
      %v971 = vrot.slane %v389, 3
      %v972 = vsel %vm963, %v970, %v971
      %v973 = vrot.slane %v392, 3
      %v974 = vrot.slane %v395, 3
      %v975 = vsel %vm963, %v973, %v974
      %v976 = vrot.slane %v398, 3
      %v977 = vrot.slane %v401, 3
      %v978 = vsel %vm963, %v976, %v977
      %v979 = vrot.slane %v404, 3
      %v980 = vrot.slane %v407, 3
      %v981 = vsel %vm963, %v979, %v980
      %v982 = vrot.slane %v410, 3
      %v983 = vrot.slane %v413, 3
      %v984 = vsel %vm963, %v982, %v983
      %v985 = vrot.slane %v416, 3
      %v986 = vrot.slane %v419, 3
      %v987 = vsel %vm963, %v985, %v986
      %988 = vrot.lane.b32.xlu0 %v966, 38
      %v989 = vpop.permute.xlu0 %988
      %990 = vrot.lane.b32.xlu0 %v965, 38
      %v991 = vpop.permute.xlu0 %990
      %992 = vrot.lane.b32.xlu0 %v969, 38
      %v993 = vpop.permute.xlu0 %992
      %994 = vrot.lane.b32.xlu0 %v968, 38
      %v995 = vpop.permute.xlu0 %994
      %996 = vrot.lane.b32.xlu0 %v972, 38
      %v997 = vpop.permute.xlu0 %996
      %998 = vrot.lane.b32.xlu0 %v971, 38
      %v999 = vpop.permute.xlu0 %998
      %1000 = vrot.lane.b32.xlu0 %v975, 38
      %v1001 = vpop.permute.xlu0 %1000
      %1002 = vrot.lane.b32.xlu0 %v974, 38
      %v1003 = vpop.permute.xlu0 %1002
      %1004 = vrot.lane.b32.xlu0 %v978, 38
      %v1005 = vpop.permute.xlu0 %1004
      %1006 = vrot.lane.b32.xlu0 %v977, 38
      %v1007 = vpop.permute.xlu0 %1006
      %1008 = vrot.lane.b32.xlu0 %v981, 38
      %v1009 = vpop.permute.xlu0 %1008
      %1010 = vrot.lane.b32.xlu0 %v980, 38
      %v1011 = vpop.permute.xlu0 %1010
      %1012 = vrot.lane.b32.xlu0 %v984, 38
      %v1013 = vpop.permute.xlu0 %1012
      %1014 = vrot.lane.b32.xlu0 %v983, 38
      %v1015 = vpop.permute.xlu0 %1014
      %1016 = vrot.lane.b32.xlu0 %v987, 38
      %v1017 = vpop.permute.xlu0 %1016
      %1018 = vrot.lane.b32.xlu0 %v986, 38
      %v1019 = vpop.permute.xlu0 %1018
      %v1036 = vadd.f32 %v947, %v989
      %v1037 = vadd.f32 %v948, %v991
      %v1038 = vadd.f32 %v949, %v993
      %v1039 = vadd.f32 %v950, %v995
      %v1040 = vadd.f32 %v951, %v997
      %v1041 = vadd.f32 %v952, %v999
      %v1042 = vadd.f32 %v953, %v1001
      %v1043 = vadd.f32 %v954, %v1003
      %v1044 = vadd.f32 %v955, %v1005
      %v1045 = vadd.f32 %v956, %v1007
      %v1046 = vadd.f32 %v957, %v1009
      %v1047 = vadd.f32 %v958, %v1011
      %v1048 = vadd.f32 %v959, %v1013
      %v1049 = vadd.f32 %v960, %v1015
      %v1050 = vadd.f32 %v961, %v1017
      %v1051 = vadd.f32 %v962, %v1019
      %vm1052 = vcmask 982736
      %v1053 = vsel %vm1052, %v1036, -inf
      %vm1054 = vcmask 979664
      %v1055 = vsel %vm1054, %v1037, -inf
      %v1056 = vmax.f32 %v1053, %v1055
      %v1057 = vrot.slane %v1056, 4
      %v1058 = vmax.f32 %v1056, %v1057
      %v1059 = vrot.slane %v1058, 2
      %v1060 = vmax.f32 %v1058, %v1059
      %v1061 = vrot.slane %v1060, 1
      %v1062 = vmax.f32 %v1060, %v1061
      %v1063 = vsel %vm1052, %v1038, -inf
      %v1064 = vsel %vm1054, %v1039, -inf
      %v1065 = vmax.f32 %v1063, %v1064
      %v1066 = vrot.slane %v1065, 4
      %v1067 = vmax.f32 %v1065, %v1066
      %v1068 = vrot.slane %v1067, 2
      %v1069 = vmax.f32 %v1067, %v1068
      %v1070 = vrot.slane %v1069, 1
      %v1071 = vmax.f32 %v1069, %v1070
      %v1072 = vsel %vm1052, %v1040, -inf
      %v1073 = vsel %vm1054, %v1041, -inf
      %v1074 = vmax.f32 %v1072, %v1073
      %v1075 = vrot.slane %v1074, 4
      %v1076 = vmax.f32 %v1074, %v1075
      %v1077 = vrot.slane %v1076, 2
      %v1078 = vmax.f32 %v1076, %v1077
      %v1079 = vrot.slane %v1078, 1
      %v1080 = vmax.f32 %v1078, %v1079
      %v1081 = vsel %vm1052, %v1042, -inf
      %v1082 = vsel %vm1054, %v1043, -inf
      %v1083 = vmax.f32 %v1081, %v1082
      %v1084 = vrot.slane %v1083, 4
      %v1085 = vmax.f32 %v1083, %v1084
      %v1086 = vrot.slane %v1085, 2
      %v1087 = vmax.f32 %v1085, %v1086
      %v1088 = vrot.slane %v1087, 1
      %v1089 = vmax.f32 %v1087, %v1088
      %v1090 = vsel %vm1052, %v1044, -inf
      %v1091 = vsel %vm1054, %v1045, -inf
      %v1092 = vmax.f32 %v1090, %v1091
      %v1093 = vrot.slane %v1092, 4
      %v1094 = vmax.f32 %v1092, %v1093
      %v1095 = vrot.slane %v1094, 2
      %v1096 = vmax.f32 %v1094, %v1095
      %v1097 = vrot.slane %v1096, 1
      %v1098 = vmax.f32 %v1096, %v1097
      %v1099 = vsel %vm1052, %v1046, -inf
      %v1100 = vsel %vm1054, %v1047, -inf
      %v1101 = vmax.f32 %v1099, %v1100
      %v1102 = vrot.slane %v1101, 4
      %v1103 = vmax.f32 %v1101, %v1102
      %v1104 = vrot.slane %v1103, 2
      %v1105 = vmax.f32 %v1103, %v1104
      %v1106 = vrot.slane %v1105, 1
      %v1107 = vmax.f32 %v1105, %v1106
      %v1108 = vsel %vm1052, %v1048, -inf
      %v1109 = vsel %vm1054, %v1049, -inf
      %v1110 = vmax.f32 %v1108, %v1109
      %v1111 = vrot.slane %v1110, 4
      %v1112 = vmax.f32 %v1110, %v1111
      %v1113 = vrot.slane %v1112, 2
      %v1114 = vmax.f32 %v1112, %v1113
      %v1115 = vrot.slane %v1114, 1
      %v1116 = vmax.f32 %v1114, %v1115
      %v1117 = vsel %vm1052, %v1050, -inf
      %v1118 = vsel %vm1054, %v1051, -inf
      %v1119 = vmax.f32 %v1117, %v1118
      %v1120 = vrot.slane %v1119, 4
      %v1121 = vmax.f32 %v1119, %v1120
      %v1122 = vrot.slane %v1121, 2
      %v1123 = vmax.f32 %v1121, %v1122
      %v1124 = vrot.slane %v1123, 1
      %v1125 = vmax.f32 %v1123, %v1124
      %v1142 = vrot.slane %v439, 1
      %v1143 = vrot.slane %v442, 1
      %v1144 = vsel %vm502, %v1142, %v1143
      %v1145 = vrot.slane %v445, 1
      %v1146 = vrot.slane %v448, 1
      %v1147 = vsel %vm502, %v1145, %v1146
      %v1148 = vrot.slane %v451, 1
      %v1149 = vrot.slane %v454, 1
      %v1150 = vsel %vm502, %v1148, %v1149
      %v1151 = vrot.slane %v457, 1
      %v1152 = vrot.slane %v460, 1
      %v1153 = vsel %vm502, %v1151, %v1152
      %v1154 = vrot.slane %v463, 1
      %v1155 = vrot.slane %v466, 1
      %v1156 = vsel %vm502, %v1154, %v1155
      %v1157 = vrot.slane %v469, 1
      %v1158 = vrot.slane %v472, 1
      %v1159 = vsel %vm502, %v1157, %v1158
      %v1160 = vrot.slane %v475, 1
      %v1161 = vrot.slane %v478, 1
      %v1162 = vsel %vm502, %v1160, %v1161
      %v1163 = vrot.slane %v481, 1
      %v1164 = vrot.slane %v484, 1
      %v1165 = vsel %vm502, %v1163, %v1164
      %1166 = vrot.lane.b32.xlu0 %v1144, 98
      %v1167 = vpop.permute.xlu0 %1166
      %1168 = vrot.lane.b32.xlu0 %v1143, 98
      %v1169 = vpop.permute.xlu0 %1168
      %1170 = vrot.lane.b32.xlu0 %v1147, 98
      %v1171 = vpop.permute.xlu0 %1170
      %1172 = vrot.lane.b32.xlu0 %v1146, 98
      %v1173 = vpop.permute.xlu0 %1172
      %1174 = vrot.lane.b32.xlu0 %v1150, 98
      %v1175 = vpop.permute.xlu0 %1174
      %1176 = vrot.lane.b32.xlu0 %v1149, 98
      %v1177 = vpop.permute.xlu0 %1176
      %1178 = vrot.lane.b32.xlu0 %v1153, 98
      %v1179 = vpop.permute.xlu0 %1178
      %1180 = vrot.lane.b32.xlu0 %v1152, 98
      %v1181 = vpop.permute.xlu0 %1180
      %1182 = vrot.lane.b32.xlu0 %v1156, 98
      %v1183 = vpop.permute.xlu0 %1182
      %1184 = vrot.lane.b32.xlu0 %v1155, 98
      %v1185 = vpop.permute.xlu0 %1184
      %1186 = vrot.lane.b32.xlu0 %v1159, 98
      %v1187 = vpop.permute.xlu0 %1186
      %1188 = vrot.lane.b32.xlu0 %v1158, 98
      %v1189 = vpop.permute.xlu0 %1188
      %1190 = vrot.lane.b32.xlu0 %v1162, 98
      %v1191 = vpop.permute.xlu0 %1190
      %1192 = vrot.lane.b32.xlu0 %v1161, 98
      %v1193 = vpop.permute.xlu0 %1192
      %1194 = vrot.lane.b32.xlu0 %v1165, 98
      %v1195 = vpop.permute.xlu0 %1194
      %1196 = vrot.lane.b32.xlu0 %v1164, 98
      %v1197 = vpop.permute.xlu0 %1196
      %v1198 = vsel %vm826, %v795, %v1167
      %v1199 = vsel %vm826, %v797, %v1169
      %v1200 = vsel %vm826, %v799, %v1171
      %v1201 = vsel %vm826, %v801, %v1173
      %v1202 = vsel %vm826, %v803, %v1175
      %v1203 = vsel %vm826, %v805, %v1177
      %v1204 = vsel %vm826, %v807, %v1179
      %v1205 = vsel %vm826, %v809, %v1181
      %v1206 = vsel %vm826, %v811, %v1183
      %v1207 = vsel %vm826, %v813, %v1185
      %v1208 = vsel %vm826, %v815, %v1187
      %v1209 = vsel %vm826, %v817, %v1189
      %v1210 = vsel %vm826, %v819, %v1191
      %v1211 = vsel %vm826, %v821, %v1193
      %v1212 = vsel %vm826, %v823, %v1195
      %v1213 = vsel %vm826, %v825, %v1197
      %v1230 = vadd.f32 %v374, %v1198
      %v1231 = vadd.f32 %v377, %v1199
      %v1232 = vadd.f32 %v380, %v1200
      %v1233 = vadd.f32 %v383, %v1201
      %v1234 = vadd.f32 %v386, %v1202
      %v1235 = vadd.f32 %v389, %v1203
      %v1236 = vadd.f32 %v392, %v1204
      %v1237 = vadd.f32 %v395, %v1205
      %v1238 = vadd.f32 %v398, %v1206
      %v1239 = vadd.f32 %v401, %v1207
      %v1240 = vadd.f32 %v404, %v1208
      %v1241 = vadd.f32 %v407, %v1209
      %v1242 = vadd.f32 %v410, %v1210
      %v1243 = vadd.f32 %v413, %v1211
      %v1244 = vadd.f32 %v416, %v1212
      %v1245 = vadd.f32 %v419, %v1213
      %v1246 = vrot.slane %v439, 2
      %v1247 = vrot.slane %v442, 2
      %v1248 = vsel %vm591, %v1246, %v1247
      %v1249 = vrot.slane %v445, 2
      %v1250 = vrot.slane %v448, 2
      %v1251 = vsel %vm591, %v1249, %v1250
      %v1252 = vrot.slane %v451, 2
      %v1253 = vrot.slane %v454, 2
      %v1254 = vsel %vm591, %v1252, %v1253
      %v1255 = vrot.slane %v457, 2
      %v1256 = vrot.slane %v460, 2
      %v1257 = vsel %vm591, %v1255, %v1256
      %v1258 = vrot.slane %v463, 2
      %v1259 = vrot.slane %v466, 2
      %v1260 = vsel %vm591, %v1258, %v1259
      %v1261 = vrot.slane %v469, 2
      %v1262 = vrot.slane %v472, 2
      %v1263 = vsel %vm591, %v1261, %v1262
      %v1264 = vrot.slane %v475, 2
      %v1265 = vrot.slane %v478, 2
      %v1266 = vsel %vm591, %v1264, %v1265
      %v1267 = vrot.slane %v481, 2
      %v1268 = vrot.slane %v484, 2
      %v1269 = vsel %vm591, %v1267, %v1268
      %1270 = vrot.lane.b32.xlu0 %v1248, 68
      %v1271 = vpop.permute.xlu0 %1270
      %1272 = vrot.lane.b32.xlu0 %v1247, 68
      %v1273 = vpop.permute.xlu0 %1272
      %1274 = vrot.lane.b32.xlu0 %v1251, 68
      %v1275 = vpop.permute.xlu0 %1274
      %1276 = vrot.lane.b32.xlu0 %v1250, 68
      %v1277 = vpop.permute.xlu0 %1276
      %1278 = vrot.lane.b32.xlu0 %v1254, 68
      %v1279 = vpop.permute.xlu0 %1278
      %1280 = vrot.lane.b32.xlu0 %v1253, 68
      %v1281 = vpop.permute.xlu0 %1280
      %1282 = vrot.lane.b32.xlu0 %v1257, 68
      %v1283 = vpop.permute.xlu0 %1282
      %1284 = vrot.lane.b32.xlu0 %v1256, 68
      %v1285 = vpop.permute.xlu0 %1284
      %1286 = vrot.lane.b32.xlu0 %v1260, 68
      %v1287 = vpop.permute.xlu0 %1286
      %1288 = vrot.lane.b32.xlu0 %v1259, 68
      %v1289 = vpop.permute.xlu0 %1288
      %1290 = vrot.lane.b32.xlu0 %v1263, 68
      %v1291 = vpop.permute.xlu0 %1290
      %1292 = vrot.lane.b32.xlu0 %v1262, 68
      %v1293 = vpop.permute.xlu0 %1292
      %1294 = vrot.lane.b32.xlu0 %v1266, 68
      %v1295 = vpop.permute.xlu0 %1294
      %1296 = vrot.lane.b32.xlu0 %v1265, 68
      %v1297 = vpop.permute.xlu0 %1296
      %1298 = vrot.lane.b32.xlu0 %v1269, 68
      %v1299 = vpop.permute.xlu0 %1298
      %1300 = vrot.lane.b32.xlu0 %v1268, 68
      %v1301 = vpop.permute.xlu0 %1300
      %v1318 = vadd.f32 %v1230, %v1271
      %v1319 = vadd.f32 %v1231, %v1273
      %v1320 = vadd.f32 %v1232, %v1275
      %v1321 = vadd.f32 %v1233, %v1277
      %v1322 = vadd.f32 %v1234, %v1279
      %v1323 = vadd.f32 %v1235, %v1281
      %v1324 = vadd.f32 %v1236, %v1283
      %v1325 = vadd.f32 %v1237, %v1285
      %v1326 = vadd.f32 %v1238, %v1287
      %v1327 = vadd.f32 %v1239, %v1289
      %v1328 = vadd.f32 %v1240, %v1291
      %v1329 = vadd.f32 %v1241, %v1293
      %v1330 = vadd.f32 %v1242, %v1295
      %v1331 = vadd.f32 %v1243, %v1297
      %v1332 = vadd.f32 %v1244, %v1299
      %v1333 = vadd.f32 %v1245, %v1301
      %v1334 = vrot.slane %v439, 3
      %v1335 = vrot.slane %v442, 3
      %v1336 = vsel %vm963, %v1334, %v1335
      %v1337 = vrot.slane %v445, 3
      %v1338 = vrot.slane %v448, 3
      %v1339 = vsel %vm963, %v1337, %v1338
      %v1340 = vrot.slane %v451, 3
      %v1341 = vrot.slane %v454, 3
      %v1342 = vsel %vm963, %v1340, %v1341
      %v1343 = vrot.slane %v457, 3
      %v1344 = vrot.slane %v460, 3
      %v1345 = vsel %vm963, %v1343, %v1344
      %v1346 = vrot.slane %v463, 3
      %v1347 = vrot.slane %v466, 3
      %v1348 = vsel %vm963, %v1346, %v1347
      %v1349 = vrot.slane %v469, 3
      %v1350 = vrot.slane %v472, 3
      %v1351 = vsel %vm963, %v1349, %v1350
      %v1352 = vrot.slane %v475, 3
      %v1353 = vrot.slane %v478, 3
      %v1354 = vsel %vm963, %v1352, %v1353
      %v1355 = vrot.slane %v481, 3
      %v1356 = vrot.slane %v484, 3
      %v1357 = vsel %vm963, %v1355, %v1356
      %1358 = vrot.lane.b32.xlu0 %v1336, 38
      %v1359 = vpop.permute.xlu0 %1358
      %1360 = vrot.lane.b32.xlu0 %v1335, 38
      %v1361 = vpop.permute.xlu0 %1360
      %1362 = vrot.lane.b32.xlu0 %v1339, 38
      %v1363 = vpop.permute.xlu0 %1362
      %1364 = vrot.lane.b32.xlu0 %v1338, 38
      %v1365 = vpop.permute.xlu0 %1364
      %1366 = vrot.lane.b32.xlu0 %v1342, 38
      %v1367 = vpop.permute.xlu0 %1366
      %1368 = vrot.lane.b32.xlu0 %v1341, 38
      %v1369 = vpop.permute.xlu0 %1368
      %1370 = vrot.lane.b32.xlu0 %v1345, 38
      %v1371 = vpop.permute.xlu0 %1370
      %1372 = vrot.lane.b32.xlu0 %v1344, 38
      %v1373 = vpop.permute.xlu0 %1372
      %1374 = vrot.lane.b32.xlu0 %v1348, 38
      %v1375 = vpop.permute.xlu0 %1374
      %1376 = vrot.lane.b32.xlu0 %v1347, 38
      %v1377 = vpop.permute.xlu0 %1376
      %1378 = vrot.lane.b32.xlu0 %v1351, 38
      %v1379 = vpop.permute.xlu0 %1378
      %1380 = vrot.lane.b32.xlu0 %v1350, 38
      %v1381 = vpop.permute.xlu0 %1380
      %1382 = vrot.lane.b32.xlu0 %v1354, 38
      %v1383 = vpop.permute.xlu0 %1382
      %1384 = vrot.lane.b32.xlu0 %v1353, 38
      %v1385 = vpop.permute.xlu0 %1384
      %1386 = vrot.lane.b32.xlu0 %v1357, 38
      %v1387 = vpop.permute.xlu0 %1386
      %1388 = vrot.lane.b32.xlu0 %v1356, 38
      %v1389 = vpop.permute.xlu0 %1388
      %v1406 = vadd.f32 %v1318, %v1359
      %v1407 = vadd.f32 %v1319, %v1361
      %v1408 = vadd.f32 %v1320, %v1363
      %v1409 = vadd.f32 %v1321, %v1365
      %v1410 = vadd.f32 %v1322, %v1367
      %v1411 = vadd.f32 %v1323, %v1369
      %v1412 = vadd.f32 %v1324, %v1371
      %v1413 = vadd.f32 %v1325, %v1373
      %v1414 = vadd.f32 %v1326, %v1375
      %v1415 = vadd.f32 %v1327, %v1377
      %v1416 = vadd.f32 %v1328, %v1379
      %v1417 = vadd.f32 %v1329, %v1381
      %v1418 = vadd.f32 %v1330, %v1383
      %v1419 = vadd.f32 %v1331, %v1385
      %v1420 = vadd.f32 %v1332, %v1387
      %v1421 = vadd.f32 %v1333, %v1389
      %vm1422 = vcmask 1043456
      %v1423 = vrot.slane %v439, 4
      %v1424 = vrot.slane %v442, 4
      %v1425 = vsel %vm1422, %v1423, %v1424
      %v1426 = vrot.slane %v445, 4
      %v1427 = vrot.slane %v448, 4
      %v1428 = vsel %vm1422, %v1426, %v1427
      %v1429 = vrot.slane %v451, 4
      %v1430 = vrot.slane %v454, 4
      %v1431 = vsel %vm1422, %v1429, %v1430
      %v1432 = vrot.slane %v457, 4
      %v1433 = vrot.slane %v460, 4
      %v1434 = vsel %vm1422, %v1432, %v1433
      %v1435 = vrot.slane %v463, 4
      %v1436 = vrot.slane %v466, 4
      %v1437 = vsel %vm1422, %v1435, %v1436
      %v1438 = vrot.slane %v469, 4
      %v1439 = vrot.slane %v472, 4
      %v1440 = vsel %vm1422, %v1438, %v1439
      %v1441 = vrot.slane %v475, 4
      %v1442 = vrot.slane %v478, 4
      %v1443 = vsel %vm1422, %v1441, %v1442
      %v1444 = vrot.slane %v481, 4
      %v1445 = vrot.slane %v484, 4
      %v1446 = vsel %vm1422, %v1444, %v1445
      %1447 = vrot.lane.b32.xlu0 %v1425, 8
      %v1448 = vpop.permute.xlu0 %1447
      %1449 = vrot.lane.b32.xlu0 %v1424, 8
      %v1450 = vpop.permute.xlu0 %1449
      %1451 = vrot.lane.b32.xlu0 %v1428, 8
      %v1452 = vpop.permute.xlu0 %1451
      %1453 = vrot.lane.b32.xlu0 %v1427, 8
      %v1454 = vpop.permute.xlu0 %1453
      %1455 = vrot.lane.b32.xlu0 %v1431, 8
      %v1456 = vpop.permute.xlu0 %1455
      %1457 = vrot.lane.b32.xlu0 %v1430, 8
      %v1458 = vpop.permute.xlu0 %1457
      %1459 = vrot.lane.b32.xlu0 %v1434, 8
      %v1460 = vpop.permute.xlu0 %1459
      %1461 = vrot.lane.b32.xlu0 %v1433, 8
      %v1462 = vpop.permute.xlu0 %1461
      %1463 = vrot.lane.b32.xlu0 %v1437, 8
      %v1464 = vpop.permute.xlu0 %1463
      %1465 = vrot.lane.b32.xlu0 %v1436, 8
      %v1466 = vpop.permute.xlu0 %1465
      %1467 = vrot.lane.b32.xlu0 %v1440, 8
      %v1468 = vpop.permute.xlu0 %1467
      %1469 = vrot.lane.b32.xlu0 %v1439, 8
      %v1470 = vpop.permute.xlu0 %1469
      %1471 = vrot.lane.b32.xlu0 %v1443, 8
      %v1472 = vpop.permute.xlu0 %1471
      %1473 = vrot.lane.b32.xlu0 %v1442, 8
      %v1474 = vpop.permute.xlu0 %1473
      %1475 = vrot.lane.b32.xlu0 %v1446, 8
      %v1476 = vpop.permute.xlu0 %1475
      %1477 = vrot.lane.b32.xlu0 %v1445, 8
      %v1478 = vpop.permute.xlu0 %1477
      %v1495 = vadd.f32 %v1406, %v1448
      %v1496 = vadd.f32 %v1407, %v1450
      %v1497 = vadd.f32 %v1408, %v1452
      %v1498 = vadd.f32 %v1409, %v1454
      %v1499 = vadd.f32 %v1410, %v1456
      %v1500 = vadd.f32 %v1411, %v1458
      %v1501 = vadd.f32 %v1412, %v1460
      %v1502 = vadd.f32 %v1413, %v1462
      %v1503 = vadd.f32 %v1414, %v1464
      %v1504 = vadd.f32 %v1415, %v1466
      %v1505 = vadd.f32 %v1416, %v1468
      %v1506 = vadd.f32 %v1417, %v1470
      %v1507 = vadd.f32 %v1418, %v1472
      %v1508 = vadd.f32 %v1419, %v1474
      %v1509 = vadd.f32 %v1420, %v1476
      %v1510 = vadd.f32 %v1421, %v1478
      %vm1511 = vcmask 917136
      %v1512 = vsel %vm1511, %v1495, -inf
      %vm1513 = vcmask 913040
      %v1514 = vsel %vm1513, %v1496, -inf
      %v1515 = vmax.f32 %v1512, %v1514
      %v1516 = vrot.slane %v1515, 4
      %v1517 = vmax.f32 %v1515, %v1516
      %v1518 = vrot.slane %v1517, 2
      %v1519 = vmax.f32 %v1517, %v1518
      %v1520 = vrot.slane %v1519, 1
      %v1521 = vmax.f32 %v1519, %v1520
      %v1522 = vsel %vm1511, %v1497, -inf
      %v1523 = vsel %vm1513, %v1498, -inf
      %v1524 = vmax.f32 %v1522, %v1523
      %v1525 = vrot.slane %v1524, 4
      %v1526 = vmax.f32 %v1524, %v1525
      %v1527 = vrot.slane %v1526, 2
      %v1528 = vmax.f32 %v1526, %v1527
      %v1529 = vrot.slane %v1528, 1
      %v1530 = vmax.f32 %v1528, %v1529
      %v1531 = vsel %vm1511, %v1499, -inf
      %v1532 = vsel %vm1513, %v1500, -inf
      %v1533 = vmax.f32 %v1531, %v1532
      %v1534 = vrot.slane %v1533, 4
      %v1535 = vmax.f32 %v1533, %v1534
      %v1536 = vrot.slane %v1535, 2
      %v1537 = vmax.f32 %v1535, %v1536
      %v1538 = vrot.slane %v1537, 1
      %v1539 = vmax.f32 %v1537, %v1538
      %v1540 = vsel %vm1511, %v1501, -inf
      %v1541 = vsel %vm1513, %v1502, -inf
      %v1542 = vmax.f32 %v1540, %v1541
      %v1543 = vrot.slane %v1542, 4
      %v1544 = vmax.f32 %v1542, %v1543
      %v1545 = vrot.slane %v1544, 2
      %v1546 = vmax.f32 %v1544, %v1545
      %v1547 = vrot.slane %v1546, 1
      %v1548 = vmax.f32 %v1546, %v1547
      %v1549 = vsel %vm1511, %v1503, -inf
      %v1550 = vsel %vm1513, %v1504, -inf
      %v1551 = vmax.f32 %v1549, %v1550
      %v1552 = vrot.slane %v1551, 4
      %v1553 = vmax.f32 %v1551, %v1552
      %v1554 = vrot.slane %v1553, 2
      %v1555 = vmax.f32 %v1553, %v1554
      %v1556 = vrot.slane %v1555, 1
      %v1557 = vmax.f32 %v1555, %v1556
      %v1558 = vsel %vm1511, %v1505, -inf
      %v1559 = vsel %vm1513, %v1506, -inf
      %v1560 = vmax.f32 %v1558, %v1559
      %v1561 = vrot.slane %v1560, 4
      %v1562 = vmax.f32 %v1560, %v1561
      %v1563 = vrot.slane %v1562, 2
      %v1564 = vmax.f32 %v1562, %v1563
      %v1565 = vrot.slane %v1564, 1
      %v1566 = vmax.f32 %v1564, %v1565
      %v1567 = vsel %vm1511, %v1507, -inf
      %v1568 = vsel %vm1513, %v1508, -inf
      %v1569 = vmax.f32 %v1567, %v1568
      %v1570 = vrot.slane %v1569, 4
      %v1571 = vmax.f32 %v1569, %v1570
      %v1572 = vrot.slane %v1571, 2
      %v1573 = vmax.f32 %v1571, %v1572
      %v1574 = vrot.slane %v1573, 1
      %v1575 = vmax.f32 %v1573, %v1574
      %v1576 = vsel %vm1511, %v1509, -inf
      %v1577 = vsel %vm1513, %v1510, -inf
      %v1578 = vmax.f32 %v1576, %v1577
      %v1579 = vrot.slane %v1578, 4
      %v1580 = vmax.f32 %v1578, %v1579
      %v1581 = vrot.slane %v1580, 2
      %v1582 = vmax.f32 %v1580, %v1581
      %v1583 = vrot.slane %v1582, 1
      %v1584 = vmax.f32 %v1582, %v1583
      %vm1593 = vcmask 1041409
      %v1594 = vsel %vm1593, %v699, %v690
      %vm1595 = vcmask 1042434
      %v1596 = vsel %vm1595, %v708, %v1594
      %vm1597 = vcmask 1043459
      %v1598 = vsel %vm1597, %v717, %v1596
      %vm1599 = vcmask 1044484
      %v1600 = vsel %vm1599, %v726, %v1598
      %vm1601 = vcmask 1045509
      %v1602 = vsel %vm1601, %v735, %v1600
      %vm1603 = vcmask 1046534
      %v1604 = vsel %vm1603, %v744, %v1602
      %vm1605 = vcmask 1047559
      %v1606 = vsel %vm1605, %v753, %v1604
      %v1616 = vsel %vm1593, %v1071, %v1062
      %v1617 = vsel %vm1595, %v1080, %v1616
      %v1618 = vsel %vm1597, %v1089, %v1617
      %v1619 = vsel %vm1599, %v1098, %v1618
      %v1620 = vsel %vm1601, %v1107, %v1619
      %v1621 = vsel %vm1603, %v1116, %v1620
      %v1622 = vsel %vm1605, %v1125, %v1621
      %1623 = vrot.lane.b32.xlu0 %v1622, 68
      %v1624 = vpop.permute.xlu0 %1623
      %v1634 = vsel %vm1593, %v1530, %v1521
      %v1635 = vsel %vm1595, %v1539, %v1634
      %v1636 = vsel %vm1597, %v1548, %v1635
      %v1637 = vsel %vm1599, %v1557, %v1636
      %v1638 = vsel %vm1601, %v1566, %v1637
      %v1639 = vsel %vm1603, %v1575, %v1638
      %v1640 = vsel %vm1605, %v1584, %v1639
      %1641 = vrot.lane.b32.xlu0 %v1640, 106
      %v1642 = vpop.permute.xlu0 %1641
      %v1644 = vsel %vm680, %v1606, %v1624
      %vm1645 = vcmask 490496
      %v1646 = vsel %vm1645, %v1644, %v1642
      %v1647 = vld [vmem:[%s2] sm:$0x1]
      %v1649 = vperm.slane %v1647, 0
      %v1651 = vadd.f32 %v1646, %v1649
      %v1652 = vmax.f32 %v1651, 0.0
      %v1653 = vld [vmem:[%s3] sm:$0x1]
      %v1655 = vperm.slane %v1653, 0
      %v1657 = vmul.f32 %v1652, %v1655
      %vm1658 = vcmask 736256
      %v1659 = vsel %vm1658, %v1657, 0.0
      %1660 = vadd.xlane.f32.xlu0 %v1659
      %v1661 = vpop.xlane.xlu0 %1660
      %v1662 = vld [vmem:[#allocation2] sm:$0x1]
      %v1664 = vperm.slane %v1662, 0
      %v1666 = vadd.f32 %v1661, %v1664
      %vm1667 = vcmask 7168
      %1668 = vst.msk [vmem:[%s226] sm:$0xff] %vm1667, %v1666
      %p1669 = scmp.lt.s32.totalorder %s18, 1
      %s1670 = scalar_select %p1669, %s18, 1
      %s1671 = smul.addr %s1670, 8
      %s1672 = scalar_lea.vmem %s5, %s1671
      // Predicated region
      $region41: #{tpu_custom_call.1} parent=39 // pred_check
        %p1673 = pneg %p146
      $region42: #{tpu_custom_call.1} parent=39 // pred_check_branch
        %1675 = sbr.rel (%p1673) target = $region44
      $region43: #{tpu_custom_call.1} parent=39 // pred_region
        _
      $region44: #{tpu_custom_call.1} parent=39 // pred_fallthru
        _
    $region40: #{tpu_custom_call.1} parent=5 // pred_fallthru
      _
    %p1676 = scmp.le.s32.totalorder 2, %s13
    // Predicated region
    $region45: #{tpu_custom_call.1} parent=5 // pred_check
      %p1677 = pneg %p1676
    $region46: #{tpu_custom_call.1} parent=5 // pred_check_branch
      %1679 = sbr.rel (%p1677) target = $region48
    $region47: #{tpu_custom_call.1} parent=5 // pred_region
      %s1680 = ssub.s32 %s13, 2
      // Predicated region
      $region49: #{tpu_custom_call.1} parent=47 // pred_check
        %p1681 = pneg %p152
      $region50: #{tpu_custom_call.1} parent=47 // pred_check_branch
        %1683 = sbr.rel (%p1681) target = $region52
      $region51: #{tpu_custom_call.1} parent=47 // pred_region
        %p1684 = scmp.lt.s32.totalorder %s19, 1
        %s1685 = scalar_select %p1684, %s19, 1
        %s1686 = smul.addr %s1685, 8
        %s1687 = scalar_lea.vmem %s5, %s1686
      $region52: #{tpu_custom_call.1} parent=47 // pred_fallthru
        _
    $region48: #{tpu_custom_call.1} parent=5 // pred_fallthru
      _
  $region6: #{tpu_custom_call.1} parent=0 // loop_footer
    %s17 = sadd.s32 1, %s13
  $region7: #{tpu_custom_call.1} parent=0 // loop_footer_branch
    %12 = sbr.rel target = $region3
  $region8: #{tpu_custom_call.1} parent=0 // loop_exit
    _

</llo_original>
